<compile_context>
chip_gen: v7x
topology: tpu7x:2x2x1
jax: 0.10.0
libtpu: 0.0.40
codegen_flags: <defaults>
</compile_context>

<pallas_src>
import functools

import numpy as np
import jax
import jax.numpy as jnp
from jax import lax
from jax.experimental import pallas as pl
from jax.experimental.pallas import tpu as pltpu

NEG_SLOPE = 0.01  # F.leaky_relu default


def _clamp_tile(t, n, align):
    """Return t if it is a legal tile of n (divides n, aligned); else fall back to the full dim."""
    if t is not None and 0 < t <= n and n % t == 0 and t % align == 0:
        return int(t)
    return int(n)


# ----------------------------------------------------------------------------
# Kernel 1: one NGCF propagation layer (tiled SpMM + fused epilogue)
#   side = norm_adj @ ego                      (accumulated over the K grid axis)
#   sum  = leaky_relu(side @ W_gc + b_gc)
#   bi   = leaky_relu((ego * side) @ W_bi + b_bi)
#   ego' = sum + bi ;  norm = ego' * rsqrt(max(||ego'||^2, eps^2))   (== F.normalize p=2 dim=1)
#   output slab: [TM, 2D] with cols [:D] = ego', cols [D:] = norm
# ----------------------------------------------------------------------------
def ngcf_layer_kernel(adj_ref, ego_k_ref, ego_i_ref, wgc_ref, bgc_ref, wbi_ref, bbi_ref,
                      out_ref, acc_ref, *, d):
    k = pl.program_id(1)

    @pl.when(k == 0)
    def _():
        acc_ref[...] = jnp.zeros_like(acc_ref)

    # bf16 x bf16 -> f32 accumulation on the MXU
    acc_ref[...] += jnp.dot(adj_ref[...], ego_k_ref[...],
                            preferred_element_type=jnp.float32)

    @pl.when(k == pl.num_programs(1) - 1)
    def _():
        side = acc_ref[...]                       # (TM, D) f32
        ego = ego_i_ref[...]                      # (TM, D) f32 (row block of this output tile)

        s = jnp.dot(side, wgc_ref[...], preferred_element_type=jnp.float32) + bgc_ref[...]
        s = jnp.where(s >= 0, s, NEG_SLOPE * s)

        b = jnp.dot(ego * side, wbi_ref[...], preferred_element_type=jnp.float32) + bbi_ref[...]
        b = jnp.where(b >= 0, b, NEG_SLOPE * b)

        new_ego = s + b
        nrm2 = jnp.sum(new_ego * new_ego, axis=1, keepdims=True)
        inv = lax.rsqrt(jnp.maximum(nrm2, 1e-24))  # == 1 / max(||x||, 1e-12)

        out_ref[:, :d] = new_ego
        out_ref[:, d:] = new_ego * inv


def ngcf_layer(adj_mm, ego_mm, ego_f32, w_gc, b_gc, w_bi, b_bi, *, tm=256, tk=512):
    n, d = ego_f32.shape
    tm = _clamp_tile(tm, n, 8)
    tk = _clamp_tile(tk, n, 128)
    grid = (n // tm, n // tk)

    it_adj = jnp.dtype(adj_mm.dtype).itemsize
    it_ego = jnp.dtype(ego_mm.dtype).itemsize

    # Raise the scoped-VMEM cap only when large production tiles need it (demo tiles are tiny).
    vmem_need = (2 * tm * tk * it_adj + 2 * tk * d * it_ego
                 + 2 * tm * d * 4 + 2 * tm * 2 * d * 4 + tm * d * 4
                 + (2 * d * d + 2 * d) * 4)
    vmem_limit = None
    if vmem_need > (10 << 20):
        vmem_limit = int(min(2 * vmem_need, 60 << 20))  # keep headroom below v7x's 64 MiB

    cost = pl.CostEstimate(
        flops=int(2 * n * n * d + 4 * n * d * d + 12 * n * d),
        transcendentals=int(n),
        bytes_accessed=int(n * n * it_adj + n * d * (it_ego + 4)
                           + n * 2 * d * 4 + (2 * d * d + 2 * d) * 4),
    )

    return pl.pallas_call(
        functools.partial(ngcf_layer_kernel, d=d),
        out_shape=jax.ShapeDtypeStruct((n, 2 * d), jnp.float32),
        grid_spec=pltpu.PrefetchScalarGridSpec(
            num_scalar_prefetch=0,
            grid=grid,
            in_specs=[
                pl.BlockSpec((tm, tk), lambda i, k: (i, k)),   # adj tile (bf16)
                pl.BlockSpec((tk, d), lambda i, k: (k, 0)),    # ego rows for contraction (bf16)
                pl.BlockSpec((tm, d), lambda i, k: (i, 0)),    # ego rows of this output tile (f32)
                pl.BlockSpec((d, d), lambda i, k: (0, 0)),     # W_gc
                pl.BlockSpec((1, d), lambda i, k: (0, 0)),     # b_gc
                pl.BlockSpec((d, d), lambda i, k: (0, 0)),     # W_bi
                pl.BlockSpec((1, d), lambda i, k: (0, 0)),     # b_bi
            ],
            out_specs=pl.BlockSpec((tm, 2 * d), lambda i, k: (i, 0)),
            scratch_shapes=[pltpu.VMEM((tm, d), jnp.float32)],
        ),
        compiler_params=pltpu.CompilerParams(
            dimension_semantics=("parallel", "arbitrary"),
            vmem_limit_bytes=vmem_limit,
        ),
        cost_estimate=cost,
    )(adj_mm, ego_mm, ego_f32, w_gc, b_gc, w_bi, b_bi)


# ----------------------------------------------------------------------------
# Kernel 2: dual-attention fusion (softmax over 2 logits == sigmoid of logit difference)
#   logit = e0 @ (attw[:D,0]-attw[:D,1]) + e1 @ (attw[D:,0]-attw[D:,1])
#   w0    = sigmoid(logit); out = e0*w0 + e1*(1-w0)
# ----------------------------------------------------------------------------
def att_fuse_kernel(e0_ref, e1_ref, wd0_ref, wd1_ref, out_ref):
    e0 = e0_ref[...]
    e1 = e1_ref[...]
    logit = (jnp.sum(e0 * wd0_ref[...], axis=1, keepdims=True)
             + jnp.sum(e1 * wd1_ref[...], axis=1, keepdims=True))
    w0 = 1.0 / (1.0 + jnp.exp(-logit))
    out_ref[...] = e0 * w0 + e1 * (1.0 - w0)


def att_fuse(e0, e1, att_w, *, tm=512):
    n, d = e0.shape
    tm = _clamp_tile(tm, n, 8)
    wd = (att_w[:, 0] - att_w[:, 1])[None, :]     # [1, 2D], computed once outside the kernel
    wd0, wd1 = wd[:, :d], wd[:, d:]
    return pl.pallas_call(
        att_fuse_kernel,
        out_shape=jax.ShapeDtypeStruct((n, d), jnp.float32),
        grid_spec=pltpu.PrefetchScalarGridSpec(
            num_scalar_prefetch=0,
            grid=(n // tm,),
            in_specs=[
                pl.BlockSpec((tm, d), lambda i: (i, 0)),
                pl.BlockSpec((tm, d), lambda i: (i, 0)),
                pl.BlockSpec((1, d), lambda i: (0, 0)),
                pl.BlockSpec((1, d), lambda i: (0, 0)),
            ],
            out_specs=pl.BlockSpec((tm, d), lambda i: (i, 0)),
        ),
        compiler_params=pltpu.CompilerParams(dimension_semantics=("parallel",)),
        cost_estimate=pl.CostEstimate(flops=int(8 * n * d), transcendentals=int(n),
                                      bytes_accessed=int(3 * n * d * 4)),
    )(e0, e1, wd0, wd1)


# ----------------------------------------------------------------------------
# Kernel 3: rec loss — predict = sum(u*i, dim=1); BCEWithLogitsLoss, mean reduction.
# Tiled over the batch with a (1,1) f32 VMEM accumulator.
# ----------------------------------------------------------------------------
def rec_loss_kernel(u_ref, i_ref, y_ref, out_ref, acc_ref, *, total):
    step = pl.program_id(0)

    @pl.when(step == 0)
    def _():
        acc_ref[...] = jnp.zeros_like(acc_ref)

    pred = jnp.sum(u_ref[...] * i_ref[...], axis=1, keepdims=True)   # (TB, 1)
    y = y_ref[...]
    loss = (jnp.maximum(pred, 0.0) - pred * y
            + jnp.log(1.0 + jnp.exp(-jnp.abs(pred))))
    acc_ref[...] += jnp.sum(loss, axis=0, keepdims=True)

    @pl.when(step == pl.num_programs(0) - 1)
    def _():
        out_ref[...] = acc_ref[...] * (1.0 / total)


def rec_loss_pallas(u_g, i_g, labels, *, tb=512):
    bsz, d = u_g.shape
    tb = _clamp_tile(tb, bsz, 8)
    out = pl.pallas_call(
        functools.partial(rec_loss_kernel, total=float(bsz)),
        out_shape=jax.ShapeDtypeStruct((1, 1), jnp.float32),
        grid_spec=pltpu.PrefetchScalarGridSpec(
            num_scalar_prefetch=0,
            grid=(bsz // tb,),
            in_specs=[
                pl.BlockSpec((tb, d), lambda b: (b, 0)),
                pl.BlockSpec((tb, d), lambda b: (b, 0)),
                pl.BlockSpec((tb, 1), lambda b: (b, 0)),
            ],
            out_specs=pl.BlockSpec((1, 1), lambda b: (0, 0)),
            scratch_shapes=[pltpu.VMEM((1, 1), jnp.float32)],
        ),
        compiler_params=pltpu.CompilerParams(dimension_semantics=("arbitrary",)),
        cost_estimate=pl.CostEstimate(flops=int(5 * bsz * d), transcendentals=int(2 * bsz),
                                      bytes_accessed=int((2 * bsz * d + bsz) * 4)),
    )(u_g, i_g, labels)
    return out[0, 0]


# ----------------------------------------------------------------------------
# Model wrapper (glue in plain JAX)
# ----------------------------------------------------------------------------
def model_forward(params, adj, n_users, embed_dim,
                  user_idx=None, item_idx=None, labels=None, flag=1,
                  matmul_dtype=jnp.bfloat16,
                  tm=256, tk=512, att_tm=512, loss_tb=512):
    # att_exp1/att_exp2 are [2*hidden, 2]: same as the PyTorch module, this assumes 1 prop layer.
    assert len(params["layers"]) == 1

    user_w = params["user_embedding"]            # [n_users+1, D]
    item_w = params["item_embedding"]            # [n_items,   D]
    ego = jnp.concatenate([user_w[:-1], item_w], axis=0)
    adj_mm = adj.astype(matmul_dtype)

    embs = [ego]
    for layer in params["layers"]:
        out2d = ngcf_layer(adj_mm, ego.astype(matmul_dtype), ego,
                           layer["w_gc"], layer["b_gc"], layer["w_bi"], layer["b_bi"],
                           tm=tm, tk=tk)
        ego = out2d[:, :embed_dim]               # ego' (feeds the next layer)
        embs.append(out2d[:, embed_dim:])        # L2-normalized output

    e0, e1 = embs[0], embs[1]                    # halves of the [N, 2D] "all_embeddings"
    ua = att_fuse(e0[:n_users], e1[:n_users], params["att_exp1"], tm=att_tm)
    ia = att_fuse(e0[n_users:], e1[n_users:], params["att_exp2"], tm=att_tm)

    if flag == 1:
        return ua, ia

    u_g = jnp.take(ua, user_idx, axis=0)
    i_g = jnp.take(ia, item_idx, axis=0)
    return rec_loss_pallas(u_g, i_g, labels, tb=loss_tb)


# ----------------------------------------------------------------------------
# Pure-JAX reference (for correctness check; uses the same bf16 SpMM operands)
# ----------------------------------------------------------------------------
def reference_forward(params, adj, n_users, embed_dim,
                      user_idx=None, item_idx=None, labels=None, flag=1,
                      matmul_dtype=jnp.bfloat16):
    user_w = params["user_embedding"]
    item_w = params["item_embedding"]
    ego = jnp.concatenate([user_w[:-1], item_w], axis=0)
    adj_mm = adj.astype(matmul_dtype)

    embs = [ego]
    for layer in params["layers"]:
        side = jnp.dot(adj_mm, ego.astype(matmul_dtype), preferred_element_type=jnp.float32)
        s = side @ layer["w_gc"] + layer["b_gc"]
        s = jnp.where(s >= 0, s, NEG_SLOPE * s)
        b = (ego * side) @ layer["w_bi"] + layer["b_bi"]
        b = jnp.where(b >= 0, b, NEG_SLOPE * b)
        ego = s + b
        nrm2 = jnp.sum(ego * ego, axis=1, keepdims=True)
        embs.append(ego * lax.rsqrt(jnp.maximum(nrm2, 1e-24)))

    all_emb = jnp.concatenate(embs, axis=1)
    all_users, all_items = all_emb[:n_users], all_emb[n_users:]

    def fuse(emb, attw):
        att = jax.nn.softmax(emb @ attw, axis=1)
        return emb[:, :embed_dim] * att[:, 0:1] + emb[:, embed_dim:] * att[:, 1:2]

    ua, ia = fuse(all_users, params["att_exp1"]), fuse(all_items, params["att_exp2"])
    if flag == 1:
        return ua, ia
    u_g, i_g = ua[user_idx], ia[item_idx]
    pred = jnp.sum(u_g * i_g, axis=1, keepdims=True)
    y = labels
    loss = jnp.maximum(pred, 0.0) - pred * y + jnp.log(1.0 + jnp.exp(-jnp.abs(pred)))
    return jnp.mean(loss)


# ----------------------------------------------------------------------------
if __name__ == "__main__":
    # Small synthetic config consistent with the module:
    # embed_size == hidden_size == 32, layer_size == [32]  =>  all_embeddings width = 2*hidden
    n_users, n_items, embed_dim = 256, 256, 32
    n_nodes = n_users + n_items
    batch = 256

    key = jax.random.PRNGKey(0)
    keys = jax.random.split(key, 12)

    stdv = 1.0 / np.sqrt(embed_dim)
    params = {
        "user_embedding": jax.random.uniform(keys[0], (n_users + 1, embed_dim),
                                             minval=-stdv, maxval=stdv, dtype=jnp.float32),
        "item_embedding": jax.random.uniform(keys[1], (n_items, embed_dim),
                                             minval=-stdv, maxval=stdv, dtype=jnp.float32),
        "att_exp1": jax.random.normal(keys[2], (2 * embed_dim, 2), dtype=jnp.float32) * 0.1,
        "att_exp2": jax.random.normal(keys[3], (2 * embed_dim, 2), dtype=jnp.float32) * 0.1,
        "layers": [{
            # nn.Linear weights pre-transposed to [D_in, D_out]
            "w_gc": jax.random.uniform(keys[4], (embed_dim, embed_dim),
                                       minval=-stdv, maxval=stdv, dtype=jnp.float32),
            "b_gc": jax.random.uniform(keys[5], (1, embed_dim),
                                       minval=-stdv, maxval=stdv, dtype=jnp.float32),
            "w_bi": jax.random.uniform(keys[6], (embed_dim, embed_dim),
                                       minval=-stdv, maxval=stdv, dtype=jnp.float32),
            "b_bi": jax.random.uniform(keys[7], (1, embed_dim),
                                       minval=-stdv, maxval=stdv, dtype=jnp.float32),
        }],
    }

    # Dense symmetric-normalized bipartite adjacency (stand-in for sparse norm_adj)
    r = (jax.random.uniform(keys[8], (n_users, n_items)) < 0.1).astype(jnp.float32)
    a = jnp.zeros((n_nodes, n_nodes), jnp.float32)
    a = a.at[:n_users, n_users:].set(r)
    a = a.at[n_users:, :n_users].set(r.T)
    a = a + jnp.eye(n_nodes, dtype=jnp.float32)
    deg = jnp.sum(a, axis=1)
    d_inv_sqrt = 1.0 / jnp.sqrt(jnp.maximum(deg, 1.0))
    adj = a * d_inv_sqrt[:, None] * d_inv_sqrt[None, :]

    # Example interaction batch (flag == 0 rec-loss path)
    user_idx = jax.random.randint(keys[9], (batch,), 0, n_users)
    item_idx = jax.random.randint(keys[10], (batch,), 0, n_items)
    labels = (jax.random.uniform(keys[11], (batch, 1)) < 0.5).astype(jnp.float32)

    # Small tiles so the demo actually exercises the (rows x K) grid + accumulator paths.
    # For production, tune per generation (e.g. v7x: tm=256, tk=1024; v6e: tm=512, tk=2048).
    kw = dict(tm=128, tk=128, att_tm=128, loss_tb=128)

    # flag == 1: return (ua_embeddings, ia_embeddings)
    ua, ia = model_forward(params, adj, n_users, embed_dim, flag=1, **kw)
    jax.block_until_ready((ua, ia))

    # flag == 0: rec loss (trust branch not implemented — see TODO at top)
    loss = model_forward(params, adj, n_users, embed_dim,
                         user_idx=user_idx, item_idx=item_idx, labels=labels, flag=0, **kw)
    jax.block_until_ready(loss)

    # Correctness check against the pure-JAX reference
    ua_ref, ia_ref = reference_forward(params, adj, n_users, embed_dim, flag=1)
    loss_ref = reference_forward(params, adj, n_users, embed_dim,
                                 user_idx=user_idx, item_idx=item_idx, labels=labels, flag=0)
    np.testing.assert_allclose(np.asarray(ua), np.asarray(ua_ref), rtol=1e-4, atol=1e-4)
    np.testing.assert_allclose(np.asarray(ia), np.asarray(ia_ref), rtol=1e-4, atol=1e-4)
    np.testing.assert_allclose(np.asarray(loss), np.asarray(loss_ref), rtol=1e-4, atol=1e-4)

    print("KERNEL_OK")
</pallas_src>

<mosaic_0001>
module attributes {stable_mosaic.version = 11 : i64} {
  func.func @ngcf_layer_kernel(%arg0: i32, %arg1: i32, %arg2: memref<128x128xbf16, #tpu.memory_space<vmem>>, %arg3: memref<128x32xbf16, #tpu.memory_space<vmem>>, %arg4: memref<128x32xf32, #tpu.memory_space<vmem>>, %arg5: memref<32x32xf32, #tpu.memory_space<vmem>>, %arg6: memref<1x32xf32, #tpu.memory_space<vmem>>, %arg7: memref<32x32xf32, #tpu.memory_space<vmem>>, %arg8: memref<1x32xf32, #tpu.memory_space<vmem>>, %arg9: memref<128x64xf32, #tpu.memory_space<vmem>>, %arg10: memref<128x32xf32, #tpu.memory_space<vmem>>) attributes {dimension_semantics = [#tpu.dimension_semantics<parallel>, #tpu.dimension_semantics<arbitrary>], iteration_bounds = array<i64: 4, 4>, scalar_prefetch = 0 : i64, scratch_operands = 1 : i64, tpu.core_type = #tpu.core_type<tc>, window_params = [{transform_indices = @transform_0, window_bounds = array<i64: 128, 128>}, {transform_indices = @transform_1, window_bounds = array<i64: 128, 32>}, {transform_indices = @transform_2, window_bounds = array<i64: 128, 32>}, {pipeline_mode = #tpu.pipeline_mode<synchronous>, transform_indices = @transform_3, window_bounds = array<i64: 32, 32>}, {pipeline_mode = #tpu.pipeline_mode<synchronous>, transform_indices = @transform_4, window_bounds = array<i64: 1, 32>}, {pipeline_mode = #tpu.pipeline_mode<synchronous>, transform_indices = @transform_5, window_bounds = array<i64: 32, 32>}, {pipeline_mode = #tpu.pipeline_mode<synchronous>, transform_indices = @transform_6, window_bounds = array<i64: 1, 32>}, {transform_indices = @transform_7, window_bounds = array<i64: 128, 64>}]} {
    %c0_i32 = arith.constant 0 : i32
    %0 = arith.cmpi eq, %arg1, %c0_i32 : i32
    %1 = arith.extui %0 : i1 to i32
    %c0_i32_0 = arith.constant 0 : i32
    %2 = arith.cmpi ne, %1, %c0_i32_0 : i32
    scf.if %2 {
      %cst_9 = arith.constant 0.000000e+00 : f32
      %12 = vector.broadcast %cst_9 : f32 to vector<128x32xf32>
      %c0_10 = arith.constant 0 : index
      %c0_11 = arith.constant 0 : index
      %13 = vector.load %arg10[%c0_10, %c0_11] : memref<128x32xf32, #tpu.memory_space<vmem>>, vector<128x32xf32>
      tpu.vector_store %arg10[%c0_10, %c0_11], %12 {strides = array<i32>} : memref<128x32xf32, #tpu.memory_space<vmem>>, vector<128x32xf32>,
    } else {
    }
    %c0 = arith.constant 0 : index
    %c0_1 = arith.constant 0 : index
    %3 = vector.load %arg10[%c0, %c0_1] : memref<128x32xf32, #tpu.memory_space<vmem>>, vector<128x32xf32>
    %c0_2 = arith.constant 0 : index
    %c0_3 = arith.constant 0 : index
    %4 = vector.load %arg2[%c0_2, %c0_3] : memref<128x128xbf16, #tpu.memory_space<vmem>>, vector<128x128xbf16>
    %c0_4 = arith.constant 0 : index
    %c0_5 = arith.constant 0 : index
    %5 = vector.load %arg3[%c0_4, %c0_5] : memref<128x32xbf16, #tpu.memory_space<vmem>>, vector<128x32xbf16>
    %cst = arith.constant dense<0.000000e+00> : vector<128x32xf32>
    %6 = tpu.matmul %4, %5, %cst {dimension_numbers = #tpu.dot_dimension_numbers<[1], [0], [0], [1], [0, 0, 1, 1], [], []>} : vector<128x128xbf16>, vector<128x32xbf16>, vector<128x32xf32> -> vector<128x32xf32>
    %7 = arith.addf %3, %6 : vector<128x32xf32>
    %c0_6 = arith.constant 0 : index
    %c0_7 = arith.constant 0 : index
    %8 = vector.load %arg10[%c0_6, %c0_7] : memref<128x32xf32, #tpu.memory_space<vmem>>, vector<128x32xf32>
    tpu.vector_store %arg10[%c0_6, %c0_7], %7 {strides = array<i32>} : memref<128x32xf32, #tpu.memory_space<vmem>>, vector<128x32xf32>,
    %c3_i32 = arith.constant 3 : i32
    %9 = arith.cmpi eq, %arg1, %c3_i32 : i32
    %10 = arith.extui %9 : i1 to i32
    %c0_i32_8 = arith.constant 0 : i32
    %11 = arith.cmpi ne, %10, %c0_i32_8 : i32
    scf.if %11 {
      %c0_9 = arith.constant 0 : index
      %c0_10 = arith.constant 0 : index
      %12 = vector.load %arg10[%c0_9, %c0_10] : memref<128x32xf32, #tpu.memory_space<vmem>>, vector<128x32xf32>
      %c0_11 = arith.constant 0 : index
      %c0_12 = arith.constant 0 : index
      %13 = vector.load %arg4[%c0_11, %c0_12] : memref<128x32xf32, #tpu.memory_space<vmem>>, vector<128x32xf32>
      %c0_13 = arith.constant 0 : index
      %c0_14 = arith.constant 0 : index
      %14 = vector.load %arg5[%c0_13, %c0_14] : memref<32x32xf32, #tpu.memory_space<vmem>>, vector<32x32xf32>
      %cst_15 = arith.constant dense<0.000000e+00> : vector<128x32xf32>
      %15 = tpu.matmul %12, %14, %cst_15 {dimension_numbers = #tpu.dot_dimension_numbers<[1], [0], [0], [1], [0, 0, 1, 1], [], []>} : vector<128x32xf32>, vector<32x32xf32>, vector<128x32xf32> -> vector<128x32xf32>
      %c0_16 = arith.constant 0 : index
      %c0_17 = arith.constant 0 : index
      %16 = vector.load %arg6[%c0_16, %c0_17] : memref<1x32xf32, #tpu.memory_space<vmem>>, vector<1x32xf32>
      %17 = vector.broadcast %16 : vector<1x32xf32> to vector<128x32xf32>
      %18 = arith.addf %15, %17 : vector<128x32xf32>
      %cst_18 = arith.constant 0.000000e+00 : f32
      %19 = vector.broadcast %cst_18 : f32 to vector<128x32xf32>
      %20 = arith.cmpf oge, %18, %19 : vector<128x32xf32>
      %cst_19 = arith.constant 0.00999999977 : f32
      %21 = vector.broadcast %cst_19 : f32 to vector<128x32xf32>
      %22 = arith.mulf %21, %18 : vector<128x32xf32>
      %23 = arith.select %20, %18, %22 : vector<128x32xi1>, vector<128x32xf32>
      %24 = arith.mulf %13, %12 : vector<128x32xf32>
      %c0_20 = arith.constant 0 : index
      %c0_21 = arith.constant 0 : index
      %25 = vector.load %arg7[%c0_20, %c0_21] : memref<32x32xf32, #tpu.memory_space<vmem>>, vector<32x32xf32>
      %cst_22 = arith.constant dense<0.000000e+00> : vector<128x32xf32>
      %26 = tpu.matmul %24, %25, %cst_22 {dimension_numbers = #tpu.dot_dimension_numbers<[1], [0], [0], [1], [0, 0, 1, 1], [], []>} : vector<128x32xf32>, vector<32x32xf32>, vector<128x32xf32> -> vector<128x32xf32>
      %c0_23 = arith.constant 0 : index
      %c0_24 = arith.constant 0 : index
      %27 = vector.load %arg8[%c0_23, %c0_24] : memref<1x32xf32, #tpu.memory_space<vmem>>, vector<1x32xf32>
      %28 = vector.broadcast %27 : vector<1x32xf32> to vector<128x32xf32>
      %29 = arith.addf %26, %28 : vector<128x32xf32>
      %cst_25 = arith.constant 0.000000e+00 : f32
      %30 = vector.broadcast %cst_25 : f32 to vector<128x32xf32>
      %31 = arith.cmpf oge, %29, %30 : vector<128x32xf32>
      %cst_26 = arith.constant 0.00999999977 : f32
      %32 = vector.broadcast %cst_26 : f32 to vector<128x32xf32>
      %33 = arith.mulf %32, %29 : vector<128x32xf32>
      %34 = arith.select %31, %29, %33 : vector<128x32xi1>, vector<128x32xf32>
      %35 = arith.addf %23, %34 : vector<128x32xf32>
      %36 = arith.mulf %35, %35 : vector<128x32xf32>
      %cst_27 = arith.constant dense<0.000000e+00> : vector<128xf32>
      %37 = vector.multi_reduction <add>, %36, %cst_27 [1] : vector<128x32xf32> to vector<128xf32>
      %38 = vector.shape_cast %37 : vector<128xf32> to vector<128x1xf32>
      %cst_28 = arith.constant 1.000000e-24 : f32
      %39 = vector.broadcast %cst_28 : f32 to vector<128x1xf32>
      %40 = arith.maximumf %38, %39 : vector<128x1xf32>
      %41 = math.rsqrt %40 : vector<128x1xf32>
      %c0_29 = arith.constant 0 : index
      %c0_30 = arith.constant 0 : index
      %42 = vector.load %arg9[%c0_29, %c0_30] : memref<128x64xf32, #tpu.memory_space<vmem>>, vector<128x32xf32>
      tpu.vector_store %arg9[%c0_29, %c0_30], %35 {strides = array<i32>} : memref<128x64xf32, #tpu.memory_space<vmem>>, vector<128x32xf32>,
      %43 = vector.broadcast %41 : vector<128x1xf32> to vector<128x32xf32>
      %44 = arith.mulf %35, %43 : vector<128x32xf32>
      %c0_31 = arith.constant 0 : index
      %c32 = arith.constant 32 : index
      %45 = vector.load %arg9[%c0_31, %c32] : memref<128x64xf32, #tpu.memory_space<vmem>>, vector<128x32xf32>
      tpu.vector_store %arg9[%c0_31, %c32], %44 {strides = array<i32>} : memref<128x64xf32, #tpu.memory_space<vmem>>, vector<128x32xf32>,
    } else {
    }
    return
  }
  func.func @transform_0(%arg0: i32, %arg1: i32) -> (i32, i32) {
    %c0_i32 = arith.constant 0 : i32
    return %arg0, %arg1 : i32, i32
  }
  func.func @transform_1(%arg0: i32, %arg1: i32) -> (i32, i32) {
    %c0_i32 = arith.constant 0 : i32
    %c0_i32_0 = arith.constant 0 : i32
    return %arg1, %c0_i32 : i32, i32
  }
  func.func @transform_2(%arg0: i32, %arg1: i32) -> (i32, i32) {
    %c0_i32 = arith.constant 0 : i32
    %c0_i32_0 = arith.constant 0 : i32
    return %arg0, %c0_i32 : i32, i32
  }
  func.func @transform_3(%arg0: i32, %arg1: i32) -> (i32, i32) {
    %c0_i32 = arith.constant 0 : i32
    %c0_i32_0 = arith.constant 0 : i32
    %c0_i32_1 = arith.constant 0 : i32
    return %c0_i32, %c0_i32_0 : i32, i32
  }
  func.func @transform_4(%arg0: i32, %arg1: i32) -> (i32, i32) {
    %c0_i32 = arith.constant 0 : i32
    %c0_i32_0 = arith.constant 0 : i32
    %c0_i32_1 = arith.constant 0 : i32
    return %c0_i32, %c0_i32_0 : i32, i32
  }
  func.func @transform_5(%arg0: i32, %arg1: i32) -> (i32, i32) {
    %c0_i32 = arith.constant 0 : i32
    %c0_i32_0 = arith.constant 0 : i32
    %c0_i32_1 = arith.constant 0 : i32
    return %c0_i32, %c0_i32_0 : i32, i32
  }
  func.func @transform_6(%arg0: i32, %arg1: i32) -> (i32, i32) {
    %c0_i32 = arith.constant 0 : i32
    %c0_i32_0 = arith.constant 0 : i32
    %c0_i32_1 = arith.constant 0 : i32
    return %c0_i32, %c0_i32_0 : i32, i32
  }
  func.func @transform_7(%arg0: i32, %arg1: i32) -> (i32, i32) {
    %c0_i32 = arith.constant 0 : i32
    %c0_i32_0 = arith.constant 0 : i32
    return %arg0, %c0_i32 : i32, i32
  }
}

</mosaic_0001>

<llo_original>
// kernel: tpu_custom_call.1
$region0: #{tpu_custom_call.1}
  #allocation0 [shape = 'u32[]', space=smem, size = 0x4, offset = 0x4, fixed_abs, tag = 'smem constant byte address 0x4 - core index']
  #allocation1 [shape = 'u32[144,128]{1,0:T(1,128)}', space=vmem, size = 0x12000, scoped, tag = 'internal scratch']
  #allocation2 [shape = 'f32[128,32]{1,0:T(8,128)}', space=vmem, size = 0x10000, scoped, tag = 'scratch operand']
  %s0 = inlined_call_operand.hbm [shape: bf16[512,512], index: 0, kind: input, shape index: {}]
  %s1 = inlined_call_operand.vmem [shape: bf16[512,32], index: 1, kind: input, shape index: {}]
  %s2 = inlined_call_operand.vmem [shape: f32[512,32], index: 2, kind: input, shape index: {}]
  %s3 = inlined_call_operand.vmem [shape: f32[32,32], index: 3, kind: input, shape index: {}]
  %s4 = inlined_call_operand.vmem [shape: f32[1,32], index: 4, kind: input, shape index: {}]
  %s5 = inlined_call_operand.vmem [shape: f32[32,32], index: 5, kind: input, shape index: {}]
  %s6 = inlined_call_operand.vmem [shape: f32[1,32], index: 6, kind: input, shape index: {}]
  %s7 = inlined_call_operand.vmem [shape: f32[512,64], index: 7, kind: output, shape index: {}]
  %s8 = sld [smem:[#allocation0]]
  $region73: #{tpu_custom_call.1} parent=0
    _
  %s10 = ssub.s32 1, %s8
  %s11 = scalar_select 0, %s10, %s8
  $region1: #{tpu_custom_call.1} parent=0
    #allocation3 [shape = 'u8[65536]{0}', space=vmem, size = 0x10000, scoped, tag = 'input window, operand 0']
    #allocation4 [shape = 's32[2]{0}', space=sflag, size = 0x8, scoped, tag = 'scoped memory for tpu_custom_call.1']
    %12 = vsyncpa [#allocation4], 0
    %s13 = scalar_lea.sflag [#allocation4], 1
    %14 = vsyncpa %s13, 0
    loop: start=0, step=1, limit=18
    $region2: #{tpu_custom_call.1} parent=1 // loop_pre_header
      _
    $region3: #{tpu_custom_call.1} parent=1 // loop_header
      %s16 = sphi 0, %s20
      %p17 = scmp.ge.s32.totalorder %s16, 18
      %s23 = sphi 0, %s35
      %s24 = sphi 0, %s31
      %s25 = sphi 0, %s23
      %s26 = sphi 0, %s24
      %s27 = sphi 0, %s25
      %s28 = sphi 0, %s26
      %s40 = sphi 0, %s42
      %s43 = sphi 0, %s40
      %s44 = sphi 0, %s43
      %s60 = sphi 0, %s44
      %s66 = sphi 0, %s68
      %s69 = sphi 0, %s66
      %s70 = sphi 0, %s69
      %s86 = sphi 0, %s70
      %s92 = sphi 0, %s94
      %s95 = sphi 0, %s92
      %s96 = sphi 0, %s95
      %s112 = sphi 0, %s96
      %s116 = sphi 0, %s116
      %s118 = sphi 0, %s116
      %s119 = sphi 0, %s118
      %s133 = sphi 0, %s119
      %s137 = sphi 0, %s137
      %s139 = sphi 0, %s137
      %s140 = sphi 0, %s139
      %s154 = sphi 0, %s140
      %s158 = sphi 0, %s158
      %s160 = sphi 0, %s158
      %s161 = sphi 0, %s160
      %s175 = sphi 0, %s161
      %s179 = sphi 0, %s179
      %s181 = sphi 0, %s179
      %s182 = sphi 0, %s181
      %s196 = sphi 0, %s182
      %s202 = sphi 0, %s204
      %s205 = sphi 0, %s202
      %s206 = sphi 0, %s205
      %s222 = sphi 0, %s206
    $region4: #{tpu_custom_call.1} parent=1 // loop_header_branch
      %19 = sbr.rel (%p17) target = $region8
    $region5: #{tpu_custom_call.1} parent=1 // loop_body
      %s21 = ssub.s32 %s16, 1
      %s22 = ssub.s32 %s16, 2
      %s29 = sadd.s32 1, %s24
      %p30 = scmp.ge.s32.totalorder %s29, 4
      %s31 = scalar_select %p30, 0, %s29
      %s32 = sadd.s32 1, %s23
      %s33 = scalar_select %p30, %s32, %s23
      %p34 = scmp.ge.s32.totalorder %s33, 4
      %s35 = scalar_select %p34, 0, %s33
      %s36 = ssub.s32 %s23, %s35
      %s37 = ssub.s32 %s24, %s31
      %s38 = sor.u32 %s36, %s37
      %p39 = scmp.eq.s32.totalorder %s38, 0
      %s41 = sadd.s32 %s40, 1
      %s42 = scalar_select %p39, %s40, %s41
      %p45 = pneg %p39
      %p46 = scmp.eq.s32.totalorder %s16, 15
      %p47 = por %p45, %p46
      %p48 = scmp.ne.s32.totalorder %s40, %s43
      %p49 = scmp.eq.s32.totalorder %s16, 0
      %p50 = por %p48, %p49
      %p51 = scmp.ne.s32.totalorder %s40, %s43
      %p52 = scmp.eq.s32.totalorder %s21, 15
      %p53 = por %p51, %p52
      %p54 = scmp.ne.s32.totalorder %s43, %s44
      %p55 = scmp.eq.s32.totalorder %s21, 0
      %p56 = por %p54, %p55
      %p57 = scmp.ne.s32.totalorder %s43, %s44
      %p58 = scmp.eq.s32.totalorder %s22, 15
      %p59 = por %p57, %p58
      %p61 = scmp.ne.s32.totalorder %s44, %s60
      %p62 = scmp.eq.s32.totalorder %s22, 0
      %p63 = por %p61, %p62
      %s64 = ssub.s32 %s24, %s31
      %p65 = scmp.eq.s32.totalorder %s64, 0
      %s67 = sadd.s32 %s66, 1
      %s68 = scalar_select %p65, %s66, %s67
      %p71 = pneg %p65
      %p72 = scmp.eq.s32.totalorder %s16, 15
      %p73 = por %p71, %p72
      %p74 = scmp.ne.s32.totalorder %s66, %s69
      %p75 = scmp.eq.s32.totalorder %s16, 0
      %p76 = por %p74, %p75
      %p77 = scmp.ne.s32.totalorder %s66, %s69
      %p78 = scmp.eq.s32.totalorder %s21, 15
      %p79 = por %p77, %p78
      %p80 = scmp.ne.s32.totalorder %s69, %s70
      %p81 = scmp.eq.s32.totalorder %s21, 0
      %p82 = por %p80, %p81
      %p83 = scmp.ne.s32.totalorder %s69, %s70
      %p84 = scmp.eq.s32.totalorder %s22, 15
      %p85 = por %p83, %p84
      %p87 = scmp.ne.s32.totalorder %s70, %s86
      %p88 = scmp.eq.s32.totalorder %s22, 0
      %p89 = por %p87, %p88
      %s90 = ssub.s32 %s23, %s35
      %p91 = scmp.eq.s32.totalorder %s90, 0
      %s93 = sadd.s32 %s92, 1
      %s94 = scalar_select %p91, %s92, %s93
      %p97 = pneg %p91
      %p98 = scmp.eq.s32.totalorder %s16, 15
      %p99 = por %p97, %p98
      %p100 = scmp.ne.s32.totalorder %s92, %s95
      %p101 = scmp.eq.s32.totalorder %s16, 0
      %p102 = por %p100, %p101
      %p103 = scmp.ne.s32.totalorder %s92, %s95
      %p104 = scmp.eq.s32.totalorder %s21, 15
      %p105 = por %p103, %p104
      %p106 = scmp.ne.s32.totalorder %s95, %s96
      %p107 = scmp.eq.s32.totalorder %s21, 0
      %p108 = por %p106, %p107
      %p109 = scmp.ne.s32.totalorder %s95, %s96
      %p110 = scmp.eq.s32.totalorder %s22, 15
      %p111 = por %p109, %p110
      %p113 = scmp.ne.s32.totalorder %s96, %s112
      %p114 = scmp.eq.s32.totalorder %s22, 0
      %p115 = por %p113, %p114
      %s117 = sadd.s32 %s116, 1
      %p120 = scmp.eq.s32.totalorder %s16, 15
      %p121 = scmp.ne.s32.totalorder %s116, %s118
      %p122 = scmp.eq.s32.totalorder %s16, 0
      %p123 = por %p121, %p122
      %p124 = scmp.ne.s32.totalorder %s116, %s118
      %p125 = scmp.eq.s32.totalorder %s21, 15
      %p126 = por %p124, %p125
      %p127 = scmp.ne.s32.totalorder %s118, %s119
      %p128 = scmp.eq.s32.totalorder %s21, 0
      %p129 = por %p127, %p128
      %p130 = scmp.ne.s32.totalorder %s118, %s119
      %p131 = scmp.eq.s32.totalorder %s22, 15
      %p132 = por %p130, %p131
      %p134 = scmp.ne.s32.totalorder %s119, %s133
      %p135 = scmp.eq.s32.totalorder %s22, 0
      %p136 = por %p134, %p135
      %s138 = sadd.s32 %s137, 1
      %p141 = scmp.eq.s32.totalorder %s16, 15
      %p142 = scmp.ne.s32.totalorder %s137, %s139
      %p143 = scmp.eq.s32.totalorder %s16, 0
      %p144 = por %p142, %p143
      %p145 = scmp.ne.s32.totalorder %s137, %s139
      %p146 = scmp.eq.s32.totalorder %s21, 15
      %p147 = por %p145, %p146
      %p148 = scmp.ne.s32.totalorder %s139, %s140
      %p149 = scmp.eq.s32.totalorder %s21, 0
      %p150 = por %p148, %p149
      %p151 = scmp.ne.s32.totalorder %s139, %s140
      %p152 = scmp.eq.s32.totalorder %s22, 15
      %p153 = por %p151, %p152
      %p155 = scmp.ne.s32.totalorder %s140, %s154
      %p156 = scmp.eq.s32.totalorder %s22, 0
      %p157 = por %p155, %p156
      %s159 = sadd.s32 %s158, 1
      %p162 = scmp.eq.s32.totalorder %s16, 15
      %p163 = scmp.ne.s32.totalorder %s158, %s160
      %p164 = scmp.eq.s32.totalorder %s16, 0
      %p165 = por %p163, %p164
      %p166 = scmp.ne.s32.totalorder %s158, %s160
      %p167 = scmp.eq.s32.totalorder %s21, 15
      %p168 = por %p166, %p167
      %p169 = scmp.ne.s32.totalorder %s160, %s161
      %p170 = scmp.eq.s32.totalorder %s21, 0
      %p171 = por %p169, %p170
      %p172 = scmp.ne.s32.totalorder %s160, %s161
      %p173 = scmp.eq.s32.totalorder %s22, 15
      %p174 = por %p172, %p173
      %p176 = scmp.ne.s32.totalorder %s161, %s175
      %p177 = scmp.eq.s32.totalorder %s22, 0
      %p178 = por %p176, %p177
      %s180 = sadd.s32 %s179, 1
      %p183 = scmp.eq.s32.totalorder %s16, 15
      %p184 = scmp.ne.s32.totalorder %s179, %s181
      %p185 = scmp.eq.s32.totalorder %s16, 0
      %p186 = por %p184, %p185
      %p187 = scmp.ne.s32.totalorder %s179, %s181
      %p188 = scmp.eq.s32.totalorder %s21, 15
      %p189 = por %p187, %p188
      %p190 = scmp.ne.s32.totalorder %s181, %s182
      %p191 = scmp.eq.s32.totalorder %s21, 0
      %p192 = por %p190, %p191
      %p193 = scmp.ne.s32.totalorder %s181, %s182
      %p194 = scmp.eq.s32.totalorder %s22, 15
      %p195 = por %p193, %p194
      %p197 = scmp.ne.s32.totalorder %s182, %s196
      %p198 = scmp.eq.s32.totalorder %s22, 0
      %p199 = por %p197, %p198
      %s200 = ssub.s32 %s23, %s35
      %p201 = scmp.eq.s32.totalorder %s200, 0
      %s203 = sadd.s32 %s202, 1
      %s204 = scalar_select %p201, %s202, %s203
      %p207 = pneg %p201
      %p208 = scmp.eq.s32.totalorder %s16, 15
      %p209 = por %p207, %p208
      %p210 = scmp.ne.s32.totalorder %s202, %s205
      %p211 = scmp.eq.s32.totalorder %s16, 0
      %p212 = por %p210, %p211
      %p213 = scmp.ne.s32.totalorder %s202, %s205
      %p214 = scmp.eq.s32.totalorder %s21, 15
      %p215 = por %p213, %p214
      %p216 = scmp.ne.s32.totalorder %s205, %s206
      %p217 = scmp.eq.s32.totalorder %s21, 0
      %p218 = por %p216, %p217
      %p219 = scmp.ne.s32.totalorder %s205, %s206
      %p220 = scmp.eq.s32.totalorder %s22, 15
      %p221 = por %p219, %p220
      %p223 = scmp.ne.s32.totalorder %s206, %s222
      %p224 = scmp.eq.s32.totalorder %s22, 0
      %p225 = por %p223, %p224
      %p226 = scmp.le.s32.totalorder 1, %s16
      %p227 = scmp.lt.s32.totalorder %s16, 17
      %p228 = pnand %p226, %p227
      %p229 = pneg %p228
      // Predicated region
      $region9: #{tpu_custom_call.1} parent=5 // pred_check
        _
      $region10: #{tpu_custom_call.1} parent=5 // pred_check_branch
        %231 = sbr.rel (%p228) target = $region12
      $region11: #{tpu_custom_call.1} parent=5 // pred_region
        %s232 = ssub.s32 %s16, 1
        // Predicated region
        $region13: #{tpu_custom_call.1} parent=11 // pred_check
          %p233 = pneg %p129
        $region14: #{tpu_custom_call.1} parent=11 // pred_check_branch
          %235 = sbr.rel (%p233) target = $region16
        $region15: #{tpu_custom_call.1} parent=11 // pred_region
          _
        $region16: #{tpu_custom_call.1} parent=11 // pred_fallthru
          _
        // Predicated region
        $region17: #{tpu_custom_call.1} parent=11 // pred_check
          %p236 = pneg %p150
        $region18: #{tpu_custom_call.1} parent=11 // pred_check_branch
          %238 = sbr.rel (%p236) target = $region20
        $region19: #{tpu_custom_call.1} parent=11 // pred_region
          _
        $region20: #{tpu_custom_call.1} parent=11 // pred_fallthru
          _
        // Predicated region
        $region21: #{tpu_custom_call.1} parent=11 // pred_check
          %p239 = pneg %p171
        $region22: #{tpu_custom_call.1} parent=11 // pred_check_branch
          %241 = sbr.rel (%p239) target = $region24
        $region23: #{tpu_custom_call.1} parent=11 // pred_region
          _
        $region24: #{tpu_custom_call.1} parent=11 // pred_fallthru
          _
        // Predicated region
        $region25: #{tpu_custom_call.1} parent=11 // pred_check
          %p242 = pneg %p192
        $region26: #{tpu_custom_call.1} parent=11 // pred_check_branch
          %244 = sbr.rel (%p242) target = $region28
        $region27: #{tpu_custom_call.1} parent=11 // pred_region
          _
        $region28: #{tpu_custom_call.1} parent=11 // pred_fallthru
          _
      $region12: #{tpu_custom_call.1} parent=5 // pred_fallthru
        _
      %p245 = scmp.lt.s32.totalorder %s16, 16
      // Predicated region
      $region29: #{tpu_custom_call.1} parent=5 // pred_check
        %p246 = pneg %p245
      $region30: #{tpu_custom_call.1} parent=5 // pred_check_branch
        %248 = sbr.rel (%p246) target = $region32
      $region31: #{tpu_custom_call.1} parent=5 // pred_region
        // Predicated region
        $region33: #{tpu_custom_call.1} parent=31 // pred_check
          %p249 = pneg %p50
        $region34: #{tpu_custom_call.1} parent=31 // pred_check_branch
          %251 = sbr.rel (%p249) target = $region36
        $region35: #{tpu_custom_call.1} parent=31 // pred_region
          %s252 = sand.u32 %s40, 1
          %s253 = scalar_lea.sflag [#allocation4], %s252
          %s254 = sand.u32 %s40, 1
          %s255 = smul.addr %s254, 64
          %s256 = scalar_lea.vmem [#allocation3], %s255
          %s257 = smul.u32 16, %s23
          %s259 = ssub.s32 1024, 1024
          %260 = vsyncadd %s253, %s259
          %s261 = smul.addr %s257, 4
          %s262 = sadd.s32 %s24, %s261
          %s263 = smul.addr %s262, 64
          %s264 = scalar_lea.hbm %s0, %s263
          %s265 = sshll.u32 %s256, 4
          %s266 = int_to_ptr.vmem [resolvable:$true] %s265
          %271 = dma.hbm_to_vmem [thread:$0]  %s264, 1024, %s266, %s253, 256, 64, 4
        $region36: #{tpu_custom_call.1} parent=31 // pred_fallthru
          _
        // Predicated region
        $region37: #{tpu_custom_call.1} parent=31 // pred_check
          %p272 = pneg %p76
        $region38: #{tpu_custom_call.1} parent=31 // pred_check_branch
          %274 = sbr.rel (%p272) target = $region40
        $region39: #{tpu_custom_call.1} parent=31 // pred_region
          %s275 = smul.u32 16, %s24
          %p276 = scmp.lt.s32.totalorder %s275, 63
          %s277 = scalar_select %p276, %s275, 63
          %s278 = smul.addr %s277, 4
          %s279 = scalar_lea.vmem %s1, %s278
          %s280 = smul.u32 16, %s24
        $region40: #{tpu_custom_call.1} parent=31 // pred_fallthru
          _
        // Predicated region
        $region41: #{tpu_custom_call.1} parent=31 // pred_check
          %p281 = pneg %p102
        $region42: #{tpu_custom_call.1} parent=31 // pred_check_branch
          %283 = sbr.rel (%p281) target = $region44
        $region43: #{tpu_custom_call.1} parent=31 // pred_region
          %s284 = smul.u32 16, %s23
          %p285 = scmp.lt.s32.totalorder %s284, 63
          %s286 = scalar_select %p285, %s284, 63
          %s287 = smul.addr %s286, 8
          %s288 = scalar_lea.vmem %s2, %s287
          %s289 = smul.u32 16, %s23
        $region44: #{tpu_custom_call.1} parent=31 // pred_fallthru
          _
      $region32: #{tpu_custom_call.1} parent=5 // pred_fallthru
        _
      %p290 = scmp.le.s32.totalorder 1, %s16
      %p291 = scmp.lt.s32.totalorder %s16, 17
      %p292 = pnand %p290, %p291
      %p293 = pneg %p292
      // Predicated region
      $region45: #{tpu_custom_call.1} parent=5 // pred_check
        _
      $region46: #{tpu_custom_call.1} parent=5 // pred_check_branch
        %295 = sbr.rel (%p292) target = $region48
      $region47: #{tpu_custom_call.1} parent=5 // pred_region
        %s296 = ssub.s32 %s16, 1
        %s297 = sand.u32 %s43, 1
        %s298 = scalar_lea.sflag [#allocation4], %s297
        %s299 = sand.u32 %s43, 1
        %s300 = smul.addr %s299, 64
        %s301 = scalar_lea.vmem [#allocation3], %s300
        // Predicated region
        $region49: #{tpu_custom_call.1} parent=47 // pred_check
          %p302 = pneg %p56
        $region50: #{tpu_custom_call.1} parent=47 // pred_check_branch
          %304 = sbr.rel (%p302) target = $region52
        $region51: #{tpu_custom_call.1} parent=47 // pred_region
          %305 = dma.done %s298, 1024
        $region52: #{tpu_custom_call.1} parent=47 // pred_fallthru
          _
        %s306 = sand.u32 %s43, 1
        %s307 = scalar_lea.sflag [#allocation4], %s306
        %s308 = sand.u32 %s43, 1
        %s309 = smul.addr %s308, 64
        %s310 = scalar_lea.vmem [#allocation3], %s309
        %p311 = pneg %p56
        %p312 = pneg %p53
        %s313 = smul.u32 16, %s26
        %p314 = scmp.lt.s32.totalorder %s313, 63
        %s315 = scalar_select %p314, %s313, 63
        %s316 = smul.addr %s315, 4
        %s317 = scalar_lea.vmem %s1, %s316
        %p318 = pneg %p82
        %p319 = pneg %p79
        %s320 = smul.u32 16, %s25
        %p321 = scmp.lt.s32.totalorder %s320, 63
        %s322 = scalar_select %p321, %s320, 63
        %s323 = smul.addr %s322, 8
        %s324 = scalar_lea.vmem %s2, %s323
        %p325 = pneg %p108
        %p326 = pneg %p105
        %p327 = pneg %p129
        %p328 = pneg %p126
        %p329 = pneg %p150
        %p330 = pneg %p147
        %p331 = pneg %p171
        %p332 = pneg %p168
        %p333 = pneg %p192
        %p334 = pneg %p189
        %p335 = pneg %p218
        %p336 = pneg %p215
        %s337 = smul.u32 16, %s25
        %p338 = scmp.lt.s32.totalorder %s337, 63
        %s339 = scalar_select %p338, %s337, 63
        %s340 = smul.addr %s339, 8
        %s341 = scalar_lea.vmem %s7, %s340
        %s342 = smul.u32 16, %s25
        %s343 = smul.u32 16, %s26
        %p344 = scmp.lt.s32.totalorder %s343, 63
        %s345 = scalar_select %p344, %s343, 63
        %s346 = smul.addr %s345, 4
        %s347 = scalar_lea.vmem %s1, %s346
        %s348 = smul.u32 16, %s26
        %s349 = smul.u32 16, %s25
        %p350 = scmp.lt.s32.totalorder %s349, 63
        %s351 = scalar_select %p350, %s349, 63
        %s352 = smul.addr %s351, 8
        %s353 = scalar_lea.vmem %s2, %s352
        %s354 = smul.u32 16, %s25
        %s355 = smul.u32 16, %s25
        %p356 = scmp.lt.s32.totalorder %s355, 63
        %s357 = scalar_select %p356, %s355, 63
        %s358 = smul.addr %s357, 8
        %s359 = scalar_lea.vmem %s7, %s358
        %s360 = smul.u32 16, %s25
        %p362 = scmp.eq.s32.totalorder %s26, 0
        // Predicated region
        $region53: #{tpu_custom_call.1} parent=47 // pred_check
          %p363 = pneg %p362
        $region54: #{tpu_custom_call.1} parent=47 // pred_check_branch
          %365 = sbr.rel (%p363) target = $region56
        $region55: #{tpu_custom_call.1} parent=47 // pred_region
          %vm366 = vcmask 261120
          %367 = vst.msk [vmem:[#allocation2] sm:$0xff] %vm366, 0.0
          %368 = vst.msk [vmem:[#allocation2 + $0x8] sm:$0xff] %vm366, 0.0
          %369 = vst.msk [vmem:[#allocation2 + $0x10] sm:$0xff] %vm366, 0.0
          %370 = vst.msk [vmem:[#allocation2 + $0x18] sm:$0xff] %vm366, 0.0
          %371 = vst.msk [vmem:[#allocation2 + $0x20] sm:$0xff] %vm366, 0.0
          %372 = vst.msk [vmem:[#allocation2 + $0x28] sm:$0xff] %vm366, 0.0
          %373 = vst.msk [vmem:[#allocation2 + $0x30] sm:$0xff] %vm366, 0.0
          %374 = vst.msk [vmem:[#allocation2 + $0x38] sm:$0xff] %vm366, 0.0
          %375 = vst.msk [vmem:[#allocation2 + $0x40] sm:$0xff] %vm366, 0.0
          %376 = vst.msk [vmem:[#allocation2 + $0x48] sm:$0xff] %vm366, 0.0
          %377 = vst.msk [vmem:[#allocation2 + $0x50] sm:$0xff] %vm366, 0.0
          %378 = vst.msk [vmem:[#allocation2 + $0x58] sm:$0xff] %vm366, 0.0
          %379 = vst.msk [vmem:[#allocation2 + $0x60] sm:$0xff] %vm366, 0.0
          %380 = vst.msk [vmem:[#allocation2 + $0x68] sm:$0xff] %vm366, 0.0
          %381 = vst.msk [vmem:[#allocation2 + $0x70] sm:$0xff] %vm366, 0.0
          %382 = vst.msk [vmem:[#allocation2 + $0x78] sm:$0xff] %vm366, 0.0
        $region56: #{tpu_custom_call.1} parent=47 // pred_fallthru
          _
        %v383 = vld [vmem:[#allocation2] sm:$0xff]
        %v384 = vld [vmem:[#allocation2 + $0x8] sm:$0xff]
        %v385 = vld [vmem:[#allocation2 + $0x10] sm:$0xff]
        %v386 = vld [vmem:[#allocation2 + $0x18] sm:$0xff]
        %v387 = vld [vmem:[#allocation2 + $0x20] sm:$0xff]
        %v388 = vld [vmem:[#allocation2 + $0x28] sm:$0xff]
        %v389 = vld [vmem:[#allocation2 + $0x30] sm:$0xff]
        %v390 = vld [vmem:[#allocation2 + $0x38] sm:$0xff]
        %v391 = vld [vmem:[#allocation2 + $0x40] sm:$0xff]
        %v392 = vld [vmem:[#allocation2 + $0x48] sm:$0xff]
        %v393 = vld [vmem:[#allocation2 + $0x50] sm:$0xff]
        %v394 = vld [vmem:[#allocation2 + $0x58] sm:$0xff]
        %v395 = vld [vmem:[#allocation2 + $0x60] sm:$0xff]
        %v396 = vld [vmem:[#allocation2 + $0x68] sm:$0xff]
        %v397 = vld [vmem:[#allocation2 + $0x70] sm:$0xff]
        %v398 = vld [vmem:[#allocation2 + $0x78] sm:$0xff]
        %v399 = vld [vmem:[%s301] sm:$0xf]
        %v400 = vld [vmem:[%s301 + $0x4] sm:$0xf]
        %v401 = vld [vmem:[%s301 + $0x8] sm:$0xf]
        %v402 = vld [vmem:[%s301 + $0xc] sm:$0xf]
        %v403 = vld [vmem:[%s301 + $0x10] sm:$0xf]
        %v404 = vld [vmem:[%s301 + $0x14] sm:$0xf]
        %v405 = vld [vmem:[%s301 + $0x18] sm:$0xf]
        %v406 = vld [vmem:[%s301 + $0x1c] sm:$0xf]
        %v407 = vld [vmem:[%s301 + $0x20] sm:$0xf]
        %v408 = vld [vmem:[%s301 + $0x24] sm:$0xf]
        %v409 = vld [vmem:[%s301 + $0x28] sm:$0xf]
        %v410 = vld [vmem:[%s301 + $0x2c] sm:$0xf]
        %v411 = vld [vmem:[%s301 + $0x30] sm:$0xf]
        %v412 = vld [vmem:[%s301 + $0x34] sm:$0xf]
        %v413 = vld [vmem:[%s301 + $0x38] sm:$0xf]
        %v414 = vld [vmem:[%s301 + $0x3c] sm:$0xf]
        %v415 = vld [vmem:[%s347] sm:$0xf]
        %v416 = vld [vmem:[%s347 + $0x4] sm:$0xf]
        %v417 = vld [vmem:[%s347 + $0x8] sm:$0xf]
        %v418 = vld [vmem:[%s347 + $0xc] sm:$0xf]
        %v419 = vld [vmem:[%s347 + $0x10] sm:$0xf]
        %v420 = vld [vmem:[%s347 + $0x14] sm:$0xf]
        %v421 = vld [vmem:[%s347 + $0x18] sm:$0xf]
        %v422 = vld [vmem:[%s347 + $0x1c] sm:$0xf]
        %v423 = vld [vmem:[%s347 + $0x20] sm:$0xf]
        %v424 = vld [vmem:[%s347 + $0x24] sm:$0xf]
        %v425 = vld [vmem:[%s347 + $0x28] sm:$0xf]
        %v426 = vld [vmem:[%s347 + $0x2c] sm:$0xf]
        %v427 = vld [vmem:[%s347 + $0x30] sm:$0xf]
        %v428 = vld [vmem:[%s347 + $0x34] sm:$0xf]
        %v429 = vld [vmem:[%s347 + $0x38] sm:$0xf]
        %v430 = vld [vmem:[%s347 + $0x3c] sm:$0xf]
        %v447 = vunpack.c.l.b16 %v399
        %v448 = vunpack.c.l.b16 %v400
        %v449 = vunpack.c.l.b16 %v401
        %v450 = vunpack.c.l.b16 %v402
        %v451 = vunpack.c.l.b16 %v403
        %v452 = vunpack.c.l.b16 %v404
        %v453 = vunpack.c.l.b16 %v405
        %v454 = vunpack.c.l.b16 %v406
        %v455 = vunpack.c.l.b16 %v407
        %v456 = vunpack.c.l.b16 %v408
        %v457 = vunpack.c.l.b16 %v409
        %v458 = vunpack.c.l.b16 %v410
        %v459 = vunpack.c.l.b16 %v411
        %v460 = vunpack.c.l.b16 %v412
        %v461 = vunpack.c.l.b16 %v413
        %v462 = vunpack.c.l.b16 %v414
        %v463 = vpack.c.b16 %v448, %v447
        %v464 = vpack.c.b16 %v450, %v449
        %v465 = vpack.c.b16 %v452, %v451
        %v466 = vpack.c.b16 %v454, %v453
        %v467 = vpack.c.b16 %v456, %v455
        %v468 = vpack.c.b16 %v458, %v457
        %v469 = vpack.c.b16 %v460, %v459
        %v470 = vpack.c.b16 %v462, %v461
        %v495 = vunpack.c.l.b16 %v415
        %v496 = vunpack.c.l.b16 %v416
        %v497 = vunpack.c.l.b16 %v417
        %v498 = vunpack.c.l.b16 %v418
        %v499 = vunpack.c.l.b16 %v419
        %v500 = vunpack.c.l.b16 %v420
        %v501 = vunpack.c.l.b16 %v421
        %v502 = vunpack.c.l.b16 %v422
        %v503 = vunpack.c.l.b16 %v423
        %v504 = vunpack.c.l.b16 %v424
        %v505 = vunpack.c.l.b16 %v425
        %v506 = vunpack.c.l.b16 %v426
        %v507 = vunpack.c.l.b16 %v427
        %v508 = vunpack.c.l.b16 %v428
        %v509 = vunpack.c.l.b16 %v429
        %v510 = vunpack.c.l.b16 %v430
        %v511 = vpack.c.b16 %v496, %v495
        %v512 = vpack.c.b16 %v498, %v497
        %v513 = vpack.c.b16 %v500, %v499
        %v514 = vpack.c.b16 %v502, %v501
        %v515 = vpack.c.b16 %v504, %v503
        %v516 = vpack.c.b16 %v506, %v505
        %v517 = vpack.c.b16 %v508, %v507
        %v518 = vpack.c.b16 %v510, %v509
        %527 = vmatprep.subr.bf16.mxu0 0
        %528 = vmatpush1.bf16.msra.mxu0 %v511
        %529 = vmatprep.subr.bf16.mxu0 0
        %530 = vmatpush1.bf16.msra.mxu0 %v512
        %531 = vmatprep.subr.bf16.mxu0 0
        %532 = vmatpush1.bf16.msra.mxu0 %v513
        %533 = vmatprep.subr.bf16.mxu0 0
        %534 = vmatpush1.bf16.msra.mxu0 %v514
        %535 = vmatprep.subr.bf16.mxu0 0
        %536 = vmatpush1.bf16.msra.mxu0 %v515
        %537 = vmatprep.subr.bf16.mxu0 0
        %538 = vmatpush1.bf16.msra.mxu0 %v516
        %539 = vmatprep.subr.bf16.mxu0 0
        %540 = vmatpush1.bf16.msra.mxu0 %v517
        %541 = vmatprep.subr.bf16.mxu0 0
        %542 = vmatpush1.bf16.msra.mxu0 %v518
        %543 = vmatprep.subr.bf16.mxu0 0
        %544 = vmatpush1.bf16.msra.mxu0 0
        %545 = vmatprep.subr.bf16.mxu0 0
        %546 = vmatpush1.bf16.msra.mxu0 0
        %547 = vmatprep.subr.bf16.mxu0 0
        %548 = vmatpush1.bf16.msra.mxu0 0
        %549 = vmatprep.subr.bf16.mxu0 0
        %550 = vmatpush1.bf16.msra.mxu0 0
        %551 = vmatprep.subr.bf16.mxu0 0
        %552 = vmatpush1.bf16.msra.mxu0 0
        %553 = vmatprep.subr.bf16.mxu0 0
        %554 = vmatpush1.bf16.msra.mxu0 0
        %555 = vmatprep.subr.bf16.mxu0 0
        %556 = vmatpush1.bf16.msra.mxu0 0
        %557 = vmatprep.subr.bf16.mxu0 0
        %558 = vmatpush1.bf16.msra.mxu0 0
        %559 = vmatprep.mubr.bf16.mxu0 0
        %560 = vmatmul.mubr.bf16.gmra.mrb[0].mxu0 %v463
        %v561 = vpop.f32.mrb[0].mxu0
        %v562 = vadd.f32 0.0, %v561
        %v563 = vpop.f32.mrb[0].mxu0
        %v564 = vpop.f32.mrb[0].mxu0
        %v565 = vadd.f32 0.0, %v564
        %v566 = vpop.f32.mrb[0].mxu0
        %567 = vmatprep.mubr.bf16.mxu0 0
        %568 = vmatmul.mubr.bf16.gmra.mrb[0].mxu0 %v464
        %v569 = vpop.f32.mrb[0].mxu0
        %v570 = vadd.f32 0.0, %v569
        %v571 = vpop.f32.mrb[0].mxu0
        %v572 = vpop.f32.mrb[0].mxu0
        %v573 = vadd.f32 0.0, %v572
        %v574 = vpop.f32.mrb[0].mxu0
        %575 = vmatprep.mubr.bf16.mxu0 0
        %576 = vmatmul.mubr.bf16.gmra.mrb[0].mxu0 %v465
        %v577 = vpop.f32.mrb[0].mxu0
        %v578 = vadd.f32 0.0, %v577
        %v579 = vpop.f32.mrb[0].mxu0
        %v580 = vpop.f32.mrb[0].mxu0
        %v581 = vadd.f32 0.0, %v580
        %v582 = vpop.f32.mrb[0].mxu0
        %583 = vmatprep.mubr.bf16.mxu0 0
        %584 = vmatmul.mubr.bf16.gmra.mrb[0].mxu0 %v466
        %v585 = vpop.f32.mrb[0].mxu0
        %v586 = vadd.f32 0.0, %v585
        %v587 = vpop.f32.mrb[0].mxu0
        %v588 = vpop.f32.mrb[0].mxu0
        %v589 = vadd.f32 0.0, %v588
        %v590 = vpop.f32.mrb[0].mxu0
        %591 = vmatprep.mubr.bf16.mxu0 0
        %592 = vmatmul.mubr.bf16.gmra.mrb[0].mxu0 %v467
        %v593 = vpop.f32.mrb[0].mxu0
        %v594 = vadd.f32 0.0, %v593
        %v595 = vpop.f32.mrb[0].mxu0
        %v596 = vpop.f32.mrb[0].mxu0
        %v597 = vadd.f32 0.0, %v596
        %v598 = vpop.f32.mrb[0].mxu0
        %599 = vmatprep.mubr.bf16.mxu0 0
        %600 = vmatmul.mubr.bf16.gmra.mrb[0].mxu0 %v468
        %v601 = vpop.f32.mrb[0].mxu0
        %v602 = vadd.f32 0.0, %v601
        %v603 = vpop.f32.mrb[0].mxu0
        %v604 = vpop.f32.mrb[0].mxu0
        %v605 = vadd.f32 0.0, %v604
        %v606 = vpop.f32.mrb[0].mxu0
        %607 = vmatprep.mubr.bf16.mxu0 0
        %608 = vmatmul.mubr.bf16.gmra.mrb[0].mxu0 %v469
        %v609 = vpop.f32.mrb[0].mxu0
        %v610 = vadd.f32 0.0, %v609
        %v611 = vpop.f32.mrb[0].mxu0
        %v612 = vpop.f32.mrb[0].mxu0
        %v613 = vadd.f32 0.0, %v612
        %v614 = vpop.f32.mrb[0].mxu0
        %615 = vmatprep.mubr.bf16.mxu0 0
        %616 = vmatmul.mubr.bf16.gmra.mrb[0].mxu0 %v470
        %v617 = vpop.f32.mrb[0].mxu0
        %v618 = vadd.f32 0.0, %v617
        %v619 = vpop.f32.mrb[0].mxu0
        %v620 = vpop.f32.mrb[0].mxu0
        %v621 = vadd.f32 0.0, %v620
        %v622 = vpop.f32.mrb[0].mxu0
        %623 = vdwg.mxu0
        %v624 = vadd.f32 %v383, %v562
        %v625 = vadd.f32 %v384, %v565
        %v626 = vadd.f32 %v385, %v570
        %v627 = vadd.f32 %v386, %v573
        %v628 = vadd.f32 %v387, %v578
        %v629 = vadd.f32 %v388, %v581
        %v630 = vadd.f32 %v389, %v586
        %v631 = vadd.f32 %v390, %v589
        %v632 = vadd.f32 %v391, %v594
        %v633 = vadd.f32 %v392, %v597
        %v634 = vadd.f32 %v393, %v602
        %v635 = vadd.f32 %v394, %v605
        %v636 = vadd.f32 %v395, %v610
        %v637 = vadd.f32 %v396, %v613
        %v638 = vadd.f32 %v397, %v618
        %v639 = vadd.f32 %v398, %v621
        %vm640 = vcmask 261120
        %641 = vst.msk [vmem:[#allocation2] sm:$0xff] %vm640, %v624
        %642 = vst.msk [vmem:[#allocation2 + $0x8] sm:$0xff] %vm640, %v625
        %643 = vst.msk [vmem:[#allocation2 + $0x10] sm:$0xff] %vm640, %v626
        %644 = vst.msk [vmem:[#allocation2 + $0x18] sm:$0xff] %vm640, %v627
        %645 = vst.msk [vmem:[#allocation2 + $0x20] sm:$0xff] %vm640, %v628
        %646 = vst.msk [vmem:[#allocation2 + $0x28] sm:$0xff] %vm640, %v629
        %647 = vst.msk [vmem:[#allocation2 + $0x30] sm:$0xff] %vm640, %v630
        %648 = vst.msk [vmem:[#allocation2 + $0x38] sm:$0xff] %vm640, %v631
        %649 = vst.msk [vmem:[#allocation2 + $0x40] sm:$0xff] %vm640, %v632
        %650 = vst.msk [vmem:[#allocation2 + $0x48] sm:$0xff] %vm640, %v633
        %651 = vst.msk [vmem:[#allocation2 + $0x50] sm:$0xff] %vm640, %v634
        %652 = vst.msk [vmem:[#allocation2 + $0x58] sm:$0xff] %vm640, %v635
        %653 = vst.msk [vmem:[#allocation2 + $0x60] sm:$0xff] %vm640, %v636
        %654 = vst.msk [vmem:[#allocation2 + $0x68] sm:$0xff] %vm640, %v637
        %655 = vst.msk [vmem:[#allocation2 + $0x70] sm:$0xff] %vm640, %v638
        %656 = vst.msk [vmem:[#allocation2 + $0x78] sm:$0xff] %vm640, %v639
        %p657 = scmp.eq.s32.totalorder %s26, 3
        // Predicated region
        $region57: #{tpu_custom_call.1} parent=47 // pred_check
          %p658 = pneg %p657
        $region58: #{tpu_custom_call.1} parent=47 // pred_check_branch
          %660 = sbr.rel (%p658) target = $region60
        $region59: #{tpu_custom_call.1} parent=47 // pred_region
          %v661 = vld [vmem:[#allocation2] sm:$0xff]
          %v662 = vld [vmem:[#allocation2 + $0x8] sm:$0xff]
          %v663 = vld [vmem:[#allocation2 + $0x10] sm:$0xff]
          %v664 = vld [vmem:[#allocation2 + $0x18] sm:$0xff]
          %v665 = vld [vmem:[#allocation2 + $0x20] sm:$0xff]
          %v666 = vld [vmem:[#allocation2 + $0x28] sm:$0xff]
          %v667 = vld [vmem:[#allocation2 + $0x30] sm:$0xff]
          %v668 = vld [vmem:[#allocation2 + $0x38] sm:$0xff]
          %v669 = vld [vmem:[#allocation2 + $0x40] sm:$0xff]
          %v670 = vld [vmem:[#allocation2 + $0x48] sm:$0xff]
          %v671 = vld [vmem:[#allocation2 + $0x50] sm:$0xff]
          %v672 = vld [vmem:[#allocation2 + $0x58] sm:$0xff]
          %v673 = vld [vmem:[#allocation2 + $0x60] sm:$0xff]
          %v674 = vld [vmem:[#allocation2 + $0x68] sm:$0xff]
          %v675 = vld [vmem:[#allocation2 + $0x70] sm:$0xff]
          %v676 = vld [vmem:[#allocation2 + $0x78] sm:$0xff]
          %v677 = vld [vmem:[%s353] sm:$0xff]
          %v678 = vld [vmem:[%s353 + $0x8] sm:$0xff]
          %v679 = vld [vmem:[%s353 + $0x10] sm:$0xff]
          %v680 = vld [vmem:[%s353 + $0x18] sm:$0xff]
          %v681 = vld [vmem:[%s353 + $0x20] sm:$0xff]
          %v682 = vld [vmem:[%s353 + $0x28] sm:$0xff]
          %v683 = vld [vmem:[%s353 + $0x30] sm:$0xff]
          %v684 = vld [vmem:[%s353 + $0x38] sm:$0xff]
          %v685 = vld [vmem:[%s353 + $0x40] sm:$0xff]
          %v686 = vld [vmem:[%s353 + $0x48] sm:$0xff]
          %v687 = vld [vmem:[%s353 + $0x50] sm:$0xff]
          %v688 = vld [vmem:[%s353 + $0x58] sm:$0xff]
          %v689 = vld [vmem:[%s353 + $0x60] sm:$0xff]
          %v690 = vld [vmem:[%s353 + $0x68] sm:$0xff]
          %v691 = vld [vmem:[%s353 + $0x70] sm:$0xff]
          %v692 = vld [vmem:[%s353 + $0x78] sm:$0xff]
          %v693 = vld [vmem:[%s3] sm:$0xff]
          %v694 = vld [vmem:[%s3 + $0x8] sm:$0xff]
          %v695 = vld [vmem:[%s3 + $0x10] sm:$0xff]
          %v696 = vld [vmem:[%s3 + $0x18] sm:$0xff]
          %v697 = vld [vmem:[%s4] sm:$0x1]
          %v699 = vlaneseq
          %v700 = vshrl.u32 %v699, 7
          %v701 = vsub.s32 0, %v700
          %v702 = vrot.slane %v697, %v701
          %v705 = vsel %vm640, %v661, 0
          %v708 = vsel %vm640, %v662, 0
          %v711 = vsel %vm640, %v663, 0
          %v714 = vsel %vm640, %v664, 0
          %v717 = vsel %vm640, %v665, 0
          %v720 = vsel %vm640, %v666, 0
          %v723 = vsel %vm640, %v667, 0
          %v726 = vsel %vm640, %v668, 0
          %v729 = vsel %vm640, %v669, 0
          %v732 = vsel %vm640, %v670, 0
          %v735 = vsel %vm640, %v671, 0
          %v738 = vsel %vm640, %v672, 0
          %v741 = vsel %vm640, %v673, 0
          %v744 = vsel %vm640, %v674, 0
          %v747 = vsel %vm640, %v675, 0
          %v750 = vsel %vm640, %v676, 0
          %752 = vmatprep.subr.mxu0 0.0
          %753 = vmatpush1.msra.mxu0 %v693
          %754 = vmatprep.subr.mxu0 0.0
          %755 = vmatpush1.msra.mxu0 %v694
          %756 = vmatprep.subr.mxu0 0.0
          %757 = vmatpush1.msra.mxu0 %v695
          %758 = vmatprep.subr.mxu0 0.0
          %759 = vmatpush1.msra.mxu0 %v696
          %760 = vmatprep.subr.mxu0 0.0
          %761 = vmatpush1.msra.mxu0 0.0
          %762 = vmatprep.subr.mxu0 0.0
          %763 = vmatpush1.msra.mxu0 0.0
          %764 = vmatprep.subr.mxu0 0.0
          %765 = vmatpush1.msra.mxu0 0.0
          %766 = vmatprep.subr.mxu0 0.0
          %767 = vmatpush1.msra.mxu0 0.0
          %768 = vmatprep.subr.mxu0 0.0
          %769 = vmatpush1.msra.mxu0 0.0
          %770 = vmatprep.subr.mxu0 0.0
          %771 = vmatpush1.msra.mxu0 0.0
          %772 = vmatprep.subr.mxu0 0.0
          %773 = vmatpush1.msra.mxu0 0.0
          %774 = vmatprep.subr.mxu0 0.0
          %775 = vmatpush1.msra.mxu0 0.0
          %776 = vmatprep.subr.mxu0 0.0
          %777 = vmatpush1.msra.mxu0 0.0
          %778 = vmatprep.subr.mxu0 0.0
          %779 = vmatpush1.msra.mxu0 0.0
          %780 = vmatprep.subr.mxu0 0.0
          %781 = vmatpush1.msra.mxu0 0.0
          %782 = vmatprep.subr.mxu0 0.0
          %783 = vmatpush1.msra.mxu0 0.0
          %784 = vmatprep.subr.mxu0 0.0
          %785 = vmatpush1.msra.mxu0 0.0
          %786 = vmatprep.subr.mxu0 0.0
          %787 = vmatpush1.msra.mxu0 0.0
          %788 = vmatprep.subr.mxu0 0.0
          %789 = vmatpush1.msra.mxu0 0.0
          %790 = vmatprep.subr.mxu0 0.0
          %791 = vmatpush1.msra.mxu0 0.0
          %792 = vmatprep.subr.mxu0 0.0
          %793 = vmatpush1.msra.mxu0 0.0
          %794 = vmatprep.subr.mxu0 0.0
          %795 = vmatpush1.msra.mxu0 0.0
          %796 = vmatprep.subr.mxu0 0.0
          %797 = vmatpush1.msra.mxu0 0.0
          %798 = vmatprep.subr.mxu0 0.0
          %799 = vmatpush1.msra.mxu0 0.0
          %800 = vmatprep.subr.mxu0 0.0
          %801 = vmatpush1.msra.mxu0 0.0
          %802 = vmatprep.subr.mxu0 0.0
          %803 = vmatpush1.msra.mxu0 0.0
          %804 = vmatprep.subr.mxu0 0.0
          %805 = vmatpush1.msra.mxu0 0.0
          %806 = vmatprep.subr.mxu0 0.0
          %807 = vmatpush1.msra.mxu0 0.0
          %808 = vmatprep.subr.mxu0 0.0
          %809 = vmatpush1.msra.mxu0 0.0
          %810 = vmatprep.subr.mxu0 0.0
          %811 = vmatpush1.msra.mxu0 0.0
          %812 = vmatprep.subr.mxu0 0.0
          %813 = vmatpush1.msra.mxu0 0.0
          %814 = vmatprep.subr.mxu0 0.0
          %815 = vmatpush1.msra.mxu0 0.0
          %816 = vmatprep.mubr.f32.mxu0 0.0
          %817 = vmatmul.mubr.f32.gmra.mrb[0].mxu0 %v705
          %v818 = vpop.f32.mrb[0].mxu0
          %v819 = vadd.f32 %v702, %v818
          %v820 = vpop.f32.mrb[0].mxu0
          %821 = vmatprep.mubr.f32.mxu0 0.0
          %822 = vmatmul.mubr.f32.gmra.mrb[0].mxu0 %v708
          %v823 = vpop.f32.mrb[0].mxu0
          %v824 = vadd.f32 %v702, %v823
          %v825 = vpop.f32.mrb[0].mxu0
          %826 = vmatprep.mubr.f32.mxu0 0.0
          %827 = vmatmul.mubr.f32.gmra.mrb[0].mxu0 %v711
          %v828 = vpop.f32.mrb[0].mxu0
          %v829 = vadd.f32 %v702, %v828
          %v830 = vpop.f32.mrb[0].mxu0
          %831 = vmatprep.mubr.f32.mxu0 0.0
          %832 = vmatmul.mubr.f32.gmra.mrb[0].mxu0 %v714
          %v833 = vpop.f32.mrb[0].mxu0
          %v834 = vadd.f32 %v702, %v833
          %v835 = vpop.f32.mrb[0].mxu0
          %836 = vmatprep.mubr.f32.mxu0 0.0
          %837 = vmatmul.mubr.f32.gmra.mrb[0].mxu0 %v717
          %v838 = vpop.f32.mrb[0].mxu0
          %v839 = vadd.f32 %v702, %v838
          %v840 = vpop.f32.mrb[0].mxu0
          %841 = vmatprep.mubr.f32.mxu0 0.0
          %842 = vmatmul.mubr.f32.gmra.mrb[0].mxu0 %v720
          %v843 = vpop.f32.mrb[0].mxu0
          %v844 = vadd.f32 %v702, %v843
          %v845 = vpop.f32.mrb[0].mxu0
          %846 = vmatprep.mubr.f32.mxu0 0.0
          %847 = vmatmul.mubr.f32.gmra.mrb[0].mxu0 %v723
          %v848 = vpop.f32.mrb[0].mxu0
          %v849 = vadd.f32 %v702, %v848
          %v850 = vpop.f32.mrb[0].mxu0
          %851 = vmatprep.mubr.f32.mxu0 0.0
          %852 = vmatmul.mubr.f32.gmra.mrb[0].mxu0 %v726
          %v853 = vpop.f32.mrb[0].mxu0
          %v854 = vadd.f32 %v702, %v853
          %v855 = vpop.f32.mrb[0].mxu0
          %856 = vmatprep.mubr.f32.mxu0 0.0
          %857 = vmatmul.mubr.f32.gmra.mrb[0].mxu0 %v729
          %v858 = vpop.f32.mrb[0].mxu0
          %v859 = vadd.f32 %v702, %v858
          %v860 = vpop.f32.mrb[0].mxu0
          %861 = vmatprep.mubr.f32.mxu0 0.0
          %862 = vmatmul.mubr.f32.gmra.mrb[0].mxu0 %v732
          %v863 = vpop.f32.mrb[0].mxu0
          %v864 = vadd.f32 %v702, %v863
          %v865 = vpop.f32.mrb[0].mxu0
          %866 = vmatprep.mubr.f32.mxu0 0.0
          %867 = vmatmul.mubr.f32.gmra.mrb[0].mxu0 %v735
          %v868 = vpop.f32.mrb[0].mxu0
          %v869 = vadd.f32 %v702, %v868
          %v870 = vpop.f32.mrb[0].mxu0
          %871 = vmatprep.mubr.f32.mxu0 0.0
          %872 = vmatmul.mubr.f32.gmra.mrb[0].mxu0 %v738
          %v873 = vpop.f32.mrb[0].mxu0
          %v874 = vadd.f32 %v702, %v873
          %v875 = vpop.f32.mrb[0].mxu0
          %876 = vmatprep.mubr.f32.mxu0 0.0
          %877 = vmatmul.mubr.f32.gmra.mrb[0].mxu0 %v741
          %v878 = vpop.f32.mrb[0].mxu0
          %v879 = vadd.f32 %v702, %v878
          %v880 = vpop.f32.mrb[0].mxu0
          %881 = vmatprep.mubr.f32.mxu0 0.0
          %882 = vmatmul.mubr.f32.gmra.mrb[0].mxu0 %v744
          %v883 = vpop.f32.mrb[0].mxu0
          %v884 = vadd.f32 %v702, %v883
          %v885 = vpop.f32.mrb[0].mxu0
          %886 = vmatprep.mubr.f32.mxu0 0.0
          %887 = vmatmul.mubr.f32.gmra.mrb[0].mxu0 %v747
          %v888 = vpop.f32.mrb[0].mxu0
          %v889 = vadd.f32 %v702, %v888
          %v890 = vpop.f32.mrb[0].mxu0
          %891 = vmatprep.mubr.f32.mxu0 0.0
          %892 = vmatmul.mubr.f32.gmra.mrb[0].mxu0 %v750
          %v893 = vpop.f32.mrb[0].mxu0
          %v894 = vadd.f32 %v702, %v893
          %v895 = vpop.f32.mrb[0].mxu0
          %896 = vdwg.mxu0
          %vm897 = vcmp.ge.f32.partialorder %v819, 0.0
          %vm898 = vcmp.ge.f32.partialorder %v824, 0.0
          %vm899 = vcmp.ge.f32.partialorder %v829, 0.0
          %vm900 = vcmp.ge.f32.partialorder %v834, 0.0
          %vm901 = vcmp.ge.f32.partialorder %v839, 0.0
          %vm902 = vcmp.ge.f32.partialorder %v844, 0.0
          %vm903 = vcmp.ge.f32.partialorder %v849, 0.0
          %vm904 = vcmp.ge.f32.partialorder %v854, 0.0
          %vm905 = vcmp.ge.f32.partialorder %v859, 0.0
          %vm906 = vcmp.ge.f32.partialorder %v864, 0.0
          %vm907 = vcmp.ge.f32.partialorder %v869, 0.0
          %vm908 = vcmp.ge.f32.partialorder %v874, 0.0
          %vm909 = vcmp.ge.f32.partialorder %v879, 0.0
          %vm910 = vcmp.ge.f32.partialorder %v884, 0.0
          %vm911 = vcmp.ge.f32.partialorder %v889, 0.0
          %vm912 = vcmp.ge.f32.partialorder %v894, 0.0
          %v913 = vmul.f32 %v819, 0.01
          %v914 = vmul.f32 %v824, 0.01
          %v915 = vmul.f32 %v829, 0.01
          %v916 = vmul.f32 %v834, 0.01
          %v917 = vmul.f32 %v839, 0.01
          %v918 = vmul.f32 %v844, 0.01
          %v919 = vmul.f32 %v849, 0.01
          %v920 = vmul.f32 %v854, 0.01
          %v921 = vmul.f32 %v859, 0.01
          %v922 = vmul.f32 %v864, 0.01
          %v923 = vmul.f32 %v869, 0.01
          %v924 = vmul.f32 %v874, 0.01
          %v925 = vmul.f32 %v879, 0.01
          %v926 = vmul.f32 %v884, 0.01
          %v927 = vmul.f32 %v889, 0.01
          %v928 = vmul.f32 %v894, 0.01
          %v929 = vsel %vm897, %v819, %v913
          %v930 = vsel %vm898, %v824, %v914
          %v931 = vsel %vm899, %v829, %v915
          %v932 = vsel %vm900, %v834, %v916
          %v933 = vsel %vm901, %v839, %v917
          %v934 = vsel %vm902, %v844, %v918
          %v935 = vsel %vm903, %v849, %v919
          %v936 = vsel %vm904, %v854, %v920
          %v937 = vsel %vm905, %v859, %v921
          %v938 = vsel %vm906, %v864, %v922
          %v939 = vsel %vm907, %v869, %v923
          %v940 = vsel %vm908, %v874, %v924
          %v941 = vsel %vm909, %v879, %v925
          %v942 = vsel %vm910, %v884, %v926
          %v943 = vsel %vm911, %v889, %v927
          %v944 = vsel %vm912, %v894, %v928
          %v945 = vmul.f32 %v677, %v661
          %v946 = vmul.f32 %v678, %v662
          %v947 = vmul.f32 %v679, %v663
          %v948 = vmul.f32 %v680, %v664
          %v949 = vmul.f32 %v681, %v665
          %v950 = vmul.f32 %v682, %v666
          %v951 = vmul.f32 %v683, %v667
          %v952 = vmul.f32 %v684, %v668
          %v953 = vmul.f32 %v685, %v669
          %v954 = vmul.f32 %v686, %v670
          %v955 = vmul.f32 %v687, %v671
          %v956 = vmul.f32 %v688, %v672
          %v957 = vmul.f32 %v689, %v673
          %v958 = vmul.f32 %v690, %v674
          %v959 = vmul.f32 %v691, %v675
          %v960 = vmul.f32 %v692, %v676
          %v961 = vld [vmem:[%s5] sm:$0xff]
          %v962 = vld [vmem:[%s5 + $0x8] sm:$0xff]
          %v963 = vld [vmem:[%s5 + $0x10] sm:$0xff]
          %v964 = vld [vmem:[%s5 + $0x18] sm:$0xff]
          %v965 = vld [vmem:[%s6] sm:$0x1]
          %v967 = vlaneseq
          %v968 = vshrl.u32 %v967, 7
          %v969 = vsub.s32 0, %v968
          %v970 = vrot.slane %v965, %v969
          %v973 = vsel %vm640, %v945, 0
          %v976 = vsel %vm640, %v946, 0
          %v979 = vsel %vm640, %v947, 0
          %v982 = vsel %vm640, %v948, 0
          %v985 = vsel %vm640, %v949, 0
          %v988 = vsel %vm640, %v950, 0
          %v991 = vsel %vm640, %v951, 0
          %v994 = vsel %vm640, %v952, 0
          %v997 = vsel %vm640, %v953, 0
          %v1000 = vsel %vm640, %v954, 0
          %v1003 = vsel %vm640, %v955, 0
          %v1006 = vsel %vm640, %v956, 0
          %v1009 = vsel %vm640, %v957, 0
          %v1012 = vsel %vm640, %v958, 0
          %v1015 = vsel %vm640, %v959, 0
          %v1018 = vsel %vm640, %v960, 0
          %1020 = vmatprep.subr.mxu0 0.0
          %1021 = vmatpush1.msra.mxu0 %v961
          %1022 = vmatprep.subr.mxu0 0.0
          %1023 = vmatpush1.msra.mxu0 %v962
          %1024 = vmatprep.subr.mxu0 0.0
          %1025 = vmatpush1.msra.mxu0 %v963
          %1026 = vmatprep.subr.mxu0 0.0
          %1027 = vmatpush1.msra.mxu0 %v964
          %1028 = vmatprep.subr.mxu0 0.0
          %1029 = vmatpush1.msra.mxu0 0.0
          %1030 = vmatprep.subr.mxu0 0.0
          %1031 = vmatpush1.msra.mxu0 0.0
          %1032 = vmatprep.subr.mxu0 0.0
          %1033 = vmatpush1.msra.mxu0 0.0
          %1034 = vmatprep.subr.mxu0 0.0
          %1035 = vmatpush1.msra.mxu0 0.0
          %1036 = vmatprep.subr.mxu0 0.0
          %1037 = vmatpush1.msra.mxu0 0.0
          %1038 = vmatprep.subr.mxu0 0.0
          %1039 = vmatpush1.msra.mxu0 0.0
          %1040 = vmatprep.subr.mxu0 0.0
          %1041 = vmatpush1.msra.mxu0 0.0
          %1042 = vmatprep.subr.mxu0 0.0
          %1043 = vmatpush1.msra.mxu0 0.0
          %1044 = vmatprep.subr.mxu0 0.0
          %1045 = vmatpush1.msra.mxu0 0.0
          %1046 = vmatprep.subr.mxu0 0.0
          %1047 = vmatpush1.msra.mxu0 0.0
          %1048 = vmatprep.subr.mxu0 0.0
          %1049 = vmatpush1.msra.mxu0 0.0
          %1050 = vmatprep.subr.mxu0 0.0
          %1051 = vmatpush1.msra.mxu0 0.0
          %1052 = vmatprep.subr.mxu0 0.0
          %1053 = vmatpush1.msra.mxu0 0.0
          %1054 = vmatprep.subr.mxu0 0.0
          %1055 = vmatpush1.msra.mxu0 0.0
          %1056 = vmatprep.subr.mxu0 0.0
          %1057 = vmatpush1.msra.mxu0 0.0
          %1058 = vmatprep.subr.mxu0 0.0
          %1059 = vmatpush1.msra.mxu0 0.0
          %1060 = vmatprep.subr.mxu0 0.0
          %1061 = vmatpush1.msra.mxu0 0.0
          %1062 = vmatprep.subr.mxu0 0.0
          %1063 = vmatpush1.msra.mxu0 0.0
          %1064 = vmatprep.subr.mxu0 0.0
          %1065 = vmatpush1.msra.mxu0 0.0
          %1066 = vmatprep.subr.mxu0 0.0
          %1067 = vmatpush1.msra.mxu0 0.0
          %1068 = vmatprep.subr.mxu0 0.0
          %1069 = vmatpush1.msra.mxu0 0.0
          %1070 = vmatprep.subr.mxu0 0.0
          %1071 = vmatpush1.msra.mxu0 0.0
          %1072 = vmatprep.subr.mxu0 0.0
          %1073 = vmatpush1.msra.mxu0 0.0
          %1074 = vmatprep.subr.mxu0 0.0
          %1075 = vmatpush1.msra.mxu0 0.0
          %1076 = vmatprep.subr.mxu0 0.0
          %1077 = vmatpush1.msra.mxu0 0.0
          %1078 = vmatprep.subr.mxu0 0.0
          %1079 = vmatpush1.msra.mxu0 0.0
          %1080 = vmatprep.subr.mxu0 0.0
          %1081 = vmatpush1.msra.mxu0 0.0
          %1082 = vmatprep.subr.mxu0 0.0
          %1083 = vmatpush1.msra.mxu0 0.0
          %1084 = vmatprep.mubr.f32.mxu0 0.0
          %1085 = vmatmul.mubr.f32.gmra.mrb[0].mxu0 %v973
          %v1086 = vpop.f32.mrb[0].mxu0
          %v1087 = vadd.f32 %v970, %v1086
          %v1088 = vpop.f32.mrb[0].mxu0
          %1089 = vmatprep.mubr.f32.mxu0 0.0
          %1090 = vmatmul.mubr.f32.gmra.mrb[0].mxu0 %v976
          %v1091 = vpop.f32.mrb[0].mxu0
          %v1092 = vadd.f32 %v970, %v1091
          %v1093 = vpop.f32.mrb[0].mxu0
          %1094 = vmatprep.mubr.f32.mxu0 0.0
          %1095 = vmatmul.mubr.f32.gmra.mrb[0].mxu0 %v979
          %v1096 = vpop.f32.mrb[0].mxu0
          %v1097 = vadd.f32 %v970, %v1096
          %v1098 = vpop.f32.mrb[0].mxu0
          %1099 = vmatprep.mubr.f32.mxu0 0.0
          %1100 = vmatmul.mubr.f32.gmra.mrb[0].mxu0 %v982
          %v1101 = vpop.f32.mrb[0].mxu0
          %v1102 = vadd.f32 %v970, %v1101
          %v1103 = vpop.f32.mrb[0].mxu0
          %1104 = vmatprep.mubr.f32.mxu0 0.0
          %1105 = vmatmul.mubr.f32.gmra.mrb[0].mxu0 %v985
          %v1106 = vpop.f32.mrb[0].mxu0
          %v1107 = vadd.f32 %v970, %v1106
          %v1108 = vpop.f32.mrb[0].mxu0
          %1109 = vmatprep.mubr.f32.mxu0 0.0
          %1110 = vmatmul.mubr.f32.gmra.mrb[0].mxu0 %v988
          %v1111 = vpop.f32.mrb[0].mxu0
          %v1112 = vadd.f32 %v970, %v1111
          %v1113 = vpop.f32.mrb[0].mxu0
          %1114 = vmatprep.mubr.f32.mxu0 0.0
          %1115 = vmatmul.mubr.f32.gmra.mrb[0].mxu0 %v991
          %v1116 = vpop.f32.mrb[0].mxu0
          %v1117 = vadd.f32 %v970, %v1116
          %v1118 = vpop.f32.mrb[0].mxu0
          %1119 = vmatprep.mubr.f32.mxu0 0.0
          %1120 = vmatmul.mubr.f32.gmra.mrb[0].mxu0 %v994
          %v1121 = vpop.f32.mrb[0].mxu0
          %v1122 = vadd.f32 %v970, %v1121
          %v1123 = vpop.f32.mrb[0].mxu0
          %1124 = vmatprep.mubr.f32.mxu0 0.0
          %1125 = vmatmul.mubr.f32.gmra.mrb[0].mxu0 %v997
          %v1126 = vpop.f32.mrb[0].mxu0
          %v1127 = vadd.f32 %v970, %v1126
          %v1128 = vpop.f32.mrb[0].mxu0
          %1129 = vmatprep.mubr.f32.mxu0 0.0
          %1130 = vmatmul.mubr.f32.gmra.mrb[0].mxu0 %v1000
          %v1131 = vpop.f32.mrb[0].mxu0
          %v1132 = vadd.f32 %v970, %v1131
          %v1133 = vpop.f32.mrb[0].mxu0
          %1134 = vmatprep.mubr.f32.mxu0 0.0
          %1135 = vmatmul.mubr.f32.gmra.mrb[0].mxu0 %v1003
          %v1136 = vpop.f32.mrb[0].mxu0
          %v1137 = vadd.f32 %v970, %v1136
          %v1138 = vpop.f32.mrb[0].mxu0
          %1139 = vmatprep.mubr.f32.mxu0 0.0
          %1140 = vmatmul.mubr.f32.gmra.mrb[0].mxu0 %v1006
          %v1141 = vpop.f32.mrb[0].mxu0
          %v1142 = vadd.f32 %v970, %v1141
          %v1143 = vpop.f32.mrb[0].mxu0
          %1144 = vmatprep.mubr.f32.mxu0 0.0
          %1145 = vmatmul.mubr.f32.gmra.mrb[0].mxu0 %v1009
          %v1146 = vpop.f32.mrb[0].mxu0
          %v1147 = vadd.f32 %v970, %v1146
          %v1148 = vpop.f32.mrb[0].mxu0
          %1149 = vmatprep.mubr.f32.mxu0 0.0
          %1150 = vmatmul.mubr.f32.gmra.mrb[0].mxu0 %v1012
          %v1151 = vpop.f32.mrb[0].mxu0
          %v1152 = vadd.f32 %v970, %v1151
          %v1153 = vpop.f32.mrb[0].mxu0
          %1154 = vmatprep.mubr.f32.mxu0 0.0
          %1155 = vmatmul.mubr.f32.gmra.mrb[0].mxu0 %v1015
          %v1156 = vpop.f32.mrb[0].mxu0
          %v1157 = vadd.f32 %v970, %v1156
          %v1158 = vpop.f32.mrb[0].mxu0
          %1159 = vmatprep.mubr.f32.mxu0 0.0
          %1160 = vmatmul.mubr.f32.gmra.mrb[0].mxu0 %v1018
          %v1161 = vpop.f32.mrb[0].mxu0
          %v1162 = vadd.f32 %v970, %v1161
          %v1163 = vpop.f32.mrb[0].mxu0
          %1164 = vdwg.mxu0
          %vm1165 = vcmp.ge.f32.partialorder %v1087, 0.0
          %vm1166 = vcmp.ge.f32.partialorder %v1092, 0.0
          %vm1167 = vcmp.ge.f32.partialorder %v1097, 0.0
          %vm1168 = vcmp.ge.f32.partialorder %v1102, 0.0
          %vm1169 = vcmp.ge.f32.partialorder %v1107, 0.0
          %vm1170 = vcmp.ge.f32.partialorder %v1112, 0.0
          %vm1171 = vcmp.ge.f32.partialorder %v1117, 0.0
          %vm1172 = vcmp.ge.f32.partialorder %v1122, 0.0
          %vm1173 = vcmp.ge.f32.partialorder %v1127, 0.0
          %vm1174 = vcmp.ge.f32.partialorder %v1132, 0.0
          %vm1175 = vcmp.ge.f32.partialorder %v1137, 0.0
          %vm1176 = vcmp.ge.f32.partialorder %v1142, 0.0
          %vm1177 = vcmp.ge.f32.partialorder %v1147, 0.0
          %vm1178 = vcmp.ge.f32.partialorder %v1152, 0.0
          %vm1179 = vcmp.ge.f32.partialorder %v1157, 0.0
          %vm1180 = vcmp.ge.f32.partialorder %v1162, 0.0
          %v1181 = vmul.f32 %v1087, 0.01
          %v1182 = vmul.f32 %v1092, 0.01
          %v1183 = vmul.f32 %v1097, 0.01
          %v1184 = vmul.f32 %v1102, 0.01
          %v1185 = vmul.f32 %v1107, 0.01
          %v1186 = vmul.f32 %v1112, 0.01
          %v1187 = vmul.f32 %v1117, 0.01
          %v1188 = vmul.f32 %v1122, 0.01
          %v1189 = vmul.f32 %v1127, 0.01
          %v1190 = vmul.f32 %v1132, 0.01
          %v1191 = vmul.f32 %v1137, 0.01
          %v1192 = vmul.f32 %v1142, 0.01
          %v1193 = vmul.f32 %v1147, 0.01
          %v1194 = vmul.f32 %v1152, 0.01
          %v1195 = vmul.f32 %v1157, 0.01
          %v1196 = vmul.f32 %v1162, 0.01
          %v1197 = vsel %vm1165, %v1087, %v1181
          %v1198 = vsel %vm1166, %v1092, %v1182
          %v1199 = vsel %vm1167, %v1097, %v1183
          %v1200 = vsel %vm1168, %v1102, %v1184
          %v1201 = vsel %vm1169, %v1107, %v1185
          %v1202 = vsel %vm1170, %v1112, %v1186
          %v1203 = vsel %vm1171, %v1117, %v1187
          %v1204 = vsel %vm1172, %v1122, %v1188
          %v1205 = vsel %vm1173, %v1127, %v1189
          %v1206 = vsel %vm1174, %v1132, %v1190
          %v1207 = vsel %vm1175, %v1137, %v1191
          %v1208 = vsel %vm1176, %v1142, %v1192
          %v1209 = vsel %vm1177, %v1147, %v1193
          %v1210 = vsel %vm1178, %v1152, %v1194
          %v1211 = vsel %vm1179, %v1157, %v1195
          %v1212 = vsel %vm1180, %v1162, %v1196
          %v1213 = vadd.f32 %v929, %v1197
          %v1214 = vadd.f32 %v930, %v1198
          %v1215 = vadd.f32 %v931, %v1199
          %v1216 = vadd.f32 %v932, %v1200
          %v1217 = vadd.f32 %v933, %v1201
          %v1218 = vadd.f32 %v934, %v1202
          %v1219 = vadd.f32 %v935, %v1203
          %v1220 = vadd.f32 %v936, %v1204
          %v1221 = vadd.f32 %v937, %v1205
          %v1222 = vadd.f32 %v938, %v1206
          %v1223 = vadd.f32 %v939, %v1207
          %v1224 = vadd.f32 %v940, %v1208
          %v1225 = vadd.f32 %v941, %v1209
          %v1226 = vadd.f32 %v942, %v1210
          %v1227 = vadd.f32 %v943, %v1211
          %v1228 = vadd.f32 %v944, %v1212
          %v1229 = vmul.f32 %v1213, %v1213
          %v1230 = vmul.f32 %v1214, %v1214
          %v1231 = vmul.f32 %v1215, %v1215
          %v1232 = vmul.f32 %v1216, %v1216
          %v1233 = vmul.f32 %v1217, %v1217
          %v1234 = vmul.f32 %v1218, %v1218
          %v1235 = vmul.f32 %v1219, %v1219
          %v1236 = vmul.f32 %v1220, %v1220
          %v1237 = vmul.f32 %v1221, %v1221
          %v1238 = vmul.f32 %v1222, %v1222
          %v1239 = vmul.f32 %v1223, %v1223
          %v1240 = vmul.f32 %v1224, %v1224
          %v1241 = vmul.f32 %v1225, %v1225
          %v1242 = vmul.f32 %v1226, %v1226
          %v1243 = vmul.f32 %v1227, %v1227
          %v1244 = vmul.f32 %v1228, %v1228
          %v1245 = vsel %vm640, %v1229, 0.0
          %1246 = vadd.xlane.f32.xlu0 %v1245
          %v1247 = vpop.xlane.xlu0 %1246
          %v1248 = vsel %vm640, %v1230, 0.0
          %1249 = vadd.xlane.f32.xlu0 %v1248
          %v1250 = vpop.xlane.xlu0 %1249
          %v1251 = vsel %vm640, %v1231, 0.0
          %1252 = vadd.xlane.f32.xlu0 %v1251
          %v1253 = vpop.xlane.xlu0 %1252
          %v1254 = vsel %vm640, %v1232, 0.0
          %1255 = vadd.xlane.f32.xlu0 %v1254
          %v1256 = vpop.xlane.xlu0 %1255
          %v1257 = vsel %vm640, %v1233, 0.0
          %1258 = vadd.xlane.f32.xlu0 %v1257
          %v1259 = vpop.xlane.xlu0 %1258
          %v1260 = vsel %vm640, %v1234, 0.0
          %1261 = vadd.xlane.f32.xlu0 %v1260
          %v1262 = vpop.xlane.xlu0 %1261
          %v1263 = vsel %vm640, %v1235, 0.0
          %1264 = vadd.xlane.f32.xlu0 %v1263
          %v1265 = vpop.xlane.xlu0 %1264
          %v1266 = vsel %vm640, %v1236, 0.0
          %1267 = vadd.xlane.f32.xlu0 %v1266
          %v1268 = vpop.xlane.xlu0 %1267
          %v1269 = vsel %vm640, %v1237, 0.0
          %1270 = vadd.xlane.f32.xlu0 %v1269
          %v1271 = vpop.xlane.xlu0 %1270
          %v1272 = vsel %vm640, %v1238, 0.0
          %1273 = vadd.xlane.f32.xlu0 %v1272
          %v1274 = vpop.xlane.xlu0 %1273
          %v1275 = vsel %vm640, %v1239, 0.0
          %1276 = vadd.xlane.f32.xlu0 %v1275
          %v1277 = vpop.xlane.xlu0 %1276
          %v1278 = vsel %vm640, %v1240, 0.0
          %1279 = vadd.xlane.f32.xlu0 %v1278
          %v1280 = vpop.xlane.xlu0 %1279
          %v1281 = vsel %vm640, %v1241, 0.0
          %1282 = vadd.xlane.f32.xlu0 %v1281
          %v1283 = vpop.xlane.xlu0 %1282
          %v1284 = vsel %vm640, %v1242, 0.0
          %1285 = vadd.xlane.f32.xlu0 %v1284
          %v1286 = vpop.xlane.xlu0 %1285
          %v1287 = vsel %vm640, %v1243, 0.0
          %1288 = vadd.xlane.f32.xlu0 %v1287
          %v1289 = vpop.xlane.xlu0 %1288
          %v1290 = vsel %vm640, %v1244, 0.0
          %1291 = vadd.xlane.f32.xlu0 %v1290
          %v1292 = vpop.xlane.xlu0 %1291
          %v1293 = vmax.f32 %v1247, 1e-24
          %v1294 = vmax.f32 %v1250, 1e-24
          %v1295 = vmax.f32 %v1253, 1e-24
          %v1296 = vmax.f32 %v1256, 1e-24
          %v1297 = vmax.f32 %v1259, 1e-24
          %v1298 = vmax.f32 %v1262, 1e-24
          %v1299 = vmax.f32 %v1265, 1e-24
          %v1300 = vmax.f32 %v1268, 1e-24
          %v1301 = vmax.f32 %v1271, 1e-24
          %v1302 = vmax.f32 %v1274, 1e-24
          %v1303 = vmax.f32 %v1277, 1e-24
          %v1304 = vmax.f32 %v1280, 1e-24
          %v1305 = vmax.f32 %v1283, 1e-24
          %v1306 = vmax.f32 %v1286, 1e-24
          %v1307 = vmax.f32 %v1289, 1e-24
          %v1308 = vmax.f32 %v1292, 1e-24
          %v1309 = vrsqrt.pop %v1293
          %v1310 = vrsqrt.pop %v1294
          %v1311 = vrsqrt.pop %v1295
          %v1312 = vrsqrt.pop %v1296
          %v1313 = vrsqrt.pop %v1297
          %v1314 = vrsqrt.pop %v1298
          %v1315 = vrsqrt.pop %v1299
          %v1316 = vrsqrt.pop %v1300
          %v1317 = vrsqrt.pop %v1301
          %v1318 = vrsqrt.pop %v1302
          %v1319 = vrsqrt.pop %v1303
          %v1320 = vrsqrt.pop %v1304
          %v1321 = vrsqrt.pop %v1305
          %v1322 = vrsqrt.pop %v1306
          %v1323 = vrsqrt.pop %v1307
          %v1324 = vrsqrt.pop %v1308
          %1325 = vst.msk [vmem:[%s359] sm:$0xff] %vm640, %v1213
          %1326 = vst.msk [vmem:[%s359 + $0x8] sm:$0xff] %vm640, %v1214
          %1327 = vst.msk [vmem:[%s359 + $0x10] sm:$0xff] %vm640, %v1215
          %1328 = vst.msk [vmem:[%s359 + $0x18] sm:$0xff] %vm640, %v1216
          %1329 = vst.msk [vmem:[%s359 + $0x20] sm:$0xff] %vm640, %v1217
          %1330 = vst.msk [vmem:[%s359 + $0x28] sm:$0xff] %vm640, %v1218
          %1331 = vst.msk [vmem:[%s359 + $0x30] sm:$0xff] %vm640, %v1219
          %1332 = vst.msk [vmem:[%s359 + $0x38] sm:$0xff] %vm640, %v1220
          %1333 = vst.msk [vmem:[%s359 + $0x40] sm:$0xff] %vm640, %v1221
          %1334 = vst.msk [vmem:[%s359 + $0x48] sm:$0xff] %vm640, %v1222
          %1335 = vst.msk [vmem:[%s359 + $0x50] sm:$0xff] %vm640, %v1223
          %1336 = vst.msk [vmem:[%s359 + $0x58] sm:$0xff] %vm640, %v1224
          %1337 = vst.msk [vmem:[%s359 + $0x60] sm:$0xff] %vm640, %v1225
          %1338 = vst.msk [vmem:[%s359 + $0x68] sm:$0xff] %vm640, %v1226
          %1339 = vst.msk [vmem:[%s359 + $0x70] sm:$0xff] %vm640, %v1227
          %1340 = vst.msk [vmem:[%s359 + $0x78] sm:$0xff] %vm640, %v1228
          %v1341 = vmul.f32 %v1213, %v1309
          %v1342 = vmul.f32 %v1214, %v1310
          %v1343 = vmul.f32 %v1215, %v1311
          %v1344 = vmul.f32 %v1216, %v1312
          %v1345 = vmul.f32 %v1217, %v1313
          %v1346 = vmul.f32 %v1218, %v1314
          %v1347 = vmul.f32 %v1219, %v1315
          %v1348 = vmul.f32 %v1220, %v1316
          %v1349 = vmul.f32 %v1221, %v1317
          %v1350 = vmul.f32 %v1222, %v1318
          %v1351 = vmul.f32 %v1223, %v1319
          %v1352 = vmul.f32 %v1224, %v1320
          %v1353 = vmul.f32 %v1225, %v1321
          %v1354 = vmul.f32 %v1226, %v1322
          %v1355 = vmul.f32 %v1227, %v1323
          %v1356 = vmul.f32 %v1228, %v1324
          %1373 = vrot.lane.b32.xlu0 %v1341, 32
          %v1374 = vpop.permute.xlu0 %1373
          %1375 = vrot.lane.b32.xlu0 %v1342, 32
          %v1376 = vpop.permute.xlu0 %1375
          %1377 = vrot.lane.b32.xlu0 %v1343, 32
          %v1378 = vpop.permute.xlu0 %1377
          %1379 = vrot.lane.b32.xlu0 %v1344, 32
          %v1380 = vpop.permute.xlu0 %1379
          %1381 = vrot.lane.b32.xlu0 %v1345, 32
          %v1382 = vpop.permute.xlu0 %1381
          %1383 = vrot.lane.b32.xlu0 %v1346, 32
          %v1384 = vpop.permute.xlu0 %1383
          %1385 = vrot.lane.b32.xlu0 %v1347, 32
          %v1386 = vpop.permute.xlu0 %1385
          %1387 = vrot.lane.b32.xlu0 %v1348, 32
          %v1388 = vpop.permute.xlu0 %1387
          %1389 = vrot.lane.b32.xlu0 %v1349, 32
          %v1390 = vpop.permute.xlu0 %1389
          %1391 = vrot.lane.b32.xlu0 %v1350, 32
          %v1392 = vpop.permute.xlu0 %1391
          %1393 = vrot.lane.b32.xlu0 %v1351, 32
          %v1394 = vpop.permute.xlu0 %1393
          %1395 = vrot.lane.b32.xlu0 %v1352, 32
          %v1396 = vpop.permute.xlu0 %1395
          %1397 = vrot.lane.b32.xlu0 %v1353, 32
          %v1398 = vpop.permute.xlu0 %1397
          %1399 = vrot.lane.b32.xlu0 %v1354, 32
          %v1400 = vpop.permute.xlu0 %1399
          %1401 = vrot.lane.b32.xlu0 %v1355, 32
          %v1402 = vpop.permute.xlu0 %1401
          %1403 = vrot.lane.b32.xlu0 %v1356, 32
          %v1404 = vpop.permute.xlu0 %1403
          %vm1421 = vcmask 523520
          %1422 = vst.msk [vmem:[%s359] sm:$0xff] %vm1421, %v1374
          %1423 = vst.msk [vmem:[%s359 + $0x8] sm:$0xff] %vm1421, %v1376
          %1424 = vst.msk [vmem:[%s359 + $0x10] sm:$0xff] %vm1421, %v1378
          %1425 = vst.msk [vmem:[%s359 + $0x18] sm:$0xff] %vm1421, %v1380
          %1426 = vst.msk [vmem:[%s359 + $0x20] sm:$0xff] %vm1421, %v1382
          %1427 = vst.msk [vmem:[%s359 + $0x28] sm:$0xff] %vm1421, %v1384
          %1428 = vst.msk [vmem:[%s359 + $0x30] sm:$0xff] %vm1421, %v1386
          %1429 = vst.msk [vmem:[%s359 + $0x38] sm:$0xff] %vm1421, %v1388
          %1430 = vst.msk [vmem:[%s359 + $0x40] sm:$0xff] %vm1421, %v1390
          %1431 = vst.msk [vmem:[%s359 + $0x48] sm:$0xff] %vm1421, %v1392
          %1432 = vst.msk [vmem:[%s359 + $0x50] sm:$0xff] %vm1421, %v1394
          %1433 = vst.msk [vmem:[%s359 + $0x58] sm:$0xff] %vm1421, %v1396
          %1434 = vst.msk [vmem:[%s359 + $0x60] sm:$0xff] %vm1421, %v1398
          %1435 = vst.msk [vmem:[%s359 + $0x68] sm:$0xff] %vm1421, %v1400
          %1436 = vst.msk [vmem:[%s359 + $0x70] sm:$0xff] %vm1421, %v1402
          %1437 = vst.msk [vmem:[%s359 + $0x78] sm:$0xff] %vm1421, %v1404
        $region60: #{tpu_custom_call.1} parent=47 // pred_fallthru
          _
        %s1438 = smul.u32 16, %s25
        %p1439 = scmp.lt.s32.totalorder %s1438, 63
        %s1440 = scalar_select %p1439, %s1438, 63
        %s1441 = smul.addr %s1440, 8
        %s1442 = scalar_lea.vmem %s7, %s1441
        // Predicated region
        $region61: #{tpu_custom_call.1} parent=47 // pred_check
          %p1443 = pneg %p215
        $region62: #{tpu_custom_call.1} parent=47 // pred_check_branch
          %1445 = sbr.rel (%p1443) target = $region64
        $region63: #{tpu_custom_call.1} parent=47 // pred_region
          %s1446 = smul.u32 16, %s25
        $region64: #{tpu_custom_call.1} parent=47 // pred_fallthru
          _
      $region48: #{tpu_custom_call.1} parent=5 // pred_fallthru
        _
      %p1447 = scmp.le.s32.totalorder 2, %s16
      // Predicated region
      $region65: #{tpu_custom_call.1} parent=5 // pred_check
        %p1448 = pneg %p1447
      $region66: #{tpu_custom_call.1} parent=5 // pred_check_branch
        %1450 = sbr.rel (%p1448) target = $region68
      $region67: #{tpu_custom_call.1} parent=5 // pred_region
        %s1451 = ssub.s32 %s16, 2
        // Predicated region
        $region69: #{tpu_custom_call.1} parent=67 // pred_check
          %p1452 = pneg %p221
        $region70: #{tpu_custom_call.1} parent=67 // pred_check_branch
          %1454 = sbr.rel (%p1452) target = $region72
        $region71: #{tpu_custom_call.1} parent=67 // pred_region
          %s1455 = smul.u32 16, %s27
          %p1456 = scmp.lt.s32.totalorder %s1455, 63
          %s1457 = scalar_select %p1456, %s1455, 63
          %s1458 = smul.addr %s1457, 8
          %s1459 = scalar_lea.vmem %s7, %s1458
        $region72: #{tpu_custom_call.1} parent=67 // pred_fallthru
          _
      $region68: #{tpu_custom_call.1} parent=5 // pred_fallthru
        _
    $region6: #{tpu_custom_call.1} parent=1 // loop_footer
      %s20 = sadd.s32 1, %s16
    $region7: #{tpu_custom_call.1} parent=1 // loop_footer_branch
      %15 = sbr.rel target = $region3
    $region8: #{tpu_custom_call.1} parent=1 // loop_exit
      _
    %1460 = vsyncpa [#allocation4], 1
    %s1461 = scalar_lea.sflag [#allocation4], 1
    %1462 = vsyncpa %s1461, 1

</llo_original>
